<compile_context>
chip_gen: v5e
topology: v5e:2x2
jax: 0.10.0
libtpu: 0.0.40
codegen_flags: <defaults>
</compile_context>

<pallas_src>
import jax
import jax.numpy as jnp
from jax.experimental import pallas as pl
from jax.experimental.pallas import tpu as pltpu

# ---------------- small synthetic CLIP-visual config ----------------
B = 2            # batch of images
CIN = 3          # RGB
IMG = 16         # image spatial size
PATCH = 8        # conv1 kernel = stride (patch size)
GRID = IMG // PATCH          # H = W = 2 after conv1
SEQ = GRID * GRID            # H*W tokens per image = 4
WIDTH = 32                   # transformer width C
HEADS = 4
HEAD_DIM = WIDTH // HEADS
MLP = 4 * WIDTH
LAYERS = 2
LN_EPS = 1e-5
TOKENS = B * SEQ             # rows of the (seq*batch, C) activation slab
ATTN_SCALE = 1.0 / float(HEAD_DIM) ** 0.5
NEG_INF = -1e30


def _layernorm(x, g, b):
    mu = jnp.mean(x, axis=-1, keepdims=True)
    var = jnp.mean(jnp.square(x - mu), axis=-1, keepdims=True)
    return (x - mu) * jax.lax.rsqrt(var + LN_EPS) * g + b


# ---------------- the single fused kernel ----------------
def _model_kernel(xp_ref, wpatch_ref, lnpre_ref,
                  inw_ref, outw_ref, fc1w_ref, fc2w_ref,
                  vecs_ref, fc1b_ref, o_ref):
    # ---- conv1 (bias=False, kernel=stride=PATCH) as patch matmul + ln_pre ----
    t = jnp.dot(xp_ref[...], wpatch_ref[...], preferred_element_type=jnp.float32)
    lnp = lnpre_ref[...]                                  # (2, WIDTH)
    x = _layernorm(t, lnp[0:1, :], lnp[1:2, :])           # (TOKENS, WIDTH) f32

    # ---- additive attention mask, generated in-kernel (no DMA'd input) ----
    # row r = b*SEQ + n; attention runs over b (the non-batch_first "sequence"
    # axis), so r1 attends to r2 iff they share the same H*W slot n.
    rows = jax.lax.broadcasted_iota(jnp.int32, (TOKENS, TOKENS), 0)
    cols = jax.lax.broadcasted_iota(jnp.int32, (TOKENS, TOKENS), 1)
    bias = jnp.where((rows % SEQ) == (cols % SEQ),
                     jnp.float32(0.0), jnp.float32(NEG_INF))

    # ---- transformer residual blocks, statically unrolled over layers ----
    for l in range(LAYERS):
        v = vecs_ref[l]                                   # (7, WIDTH) packed vectors
        ln1_g, ln1_b = v[0:1, :], v[1:2, :]
        bq = v[2:3, :]                                    # q bias, pre-scaled
        out_b = v[3:4, :]                                 # out_proj bias + folded v bias
        ln2_g, ln2_b = v[4:5, :], v[5:6, :]
        fc2_b = v[6:7, :]
        fc1_b = fc1b_ref[l]                               # (1, MLP)

        # attention sub-block: LN1 -> fused QKV -> per-head softmax -> out-proj
        h = _layernorm(x, ln1_g, ln1_b).astype(jnp.bfloat16)
        qkv = jnp.dot(h, inw_ref[l], preferred_element_type=jnp.float32)  # (TOKENS, 3W)
        q = (qkv[:, 0 * WIDTH:1 * WIDTH] + bq).astype(jnp.bfloat16)
        k = qkv[:, 1 * WIDTH:2 * WIDTH].astype(jnp.bfloat16)   # k bias dropped (shift-inv.)
        vv = qkv[:, 2 * WIDTH:3 * WIDTH].astype(jnp.bfloat16)  # v bias folded into out_b

        heads_out = []
        for hh in range(HEADS):                           # static unrolled, no grid steps
            sl = slice(hh * HEAD_DIM, (hh + 1) * HEAD_DIM)
            s = jax.lax.dot_general(q[:, sl], k[:, sl],
                                    (((1,), (1,)), ((), ())),
                                    preferred_element_type=jnp.float32)
            s = s + bias
            s = s - jnp.max(s, axis=-1, keepdims=True)
            p = jnp.exp(s)
            p = p * pl.reciprocal(jnp.sum(p, axis=-1, keepdims=True), approx=True)
            heads_out.append(jnp.dot(p.astype(jnp.bfloat16), vv[:, sl],
                                     preferred_element_type=jnp.float32))
        attn = jnp.concatenate(heads_out, axis=-1)        # (TOKENS, WIDTH) f32
        x = x + jnp.dot(attn.astype(jnp.bfloat16), outw_ref[l],
                        preferred_element_type=jnp.float32) + out_b

        # MLP sub-block: LN2 -> fc1 + QuickGELU -> fc2 + residual
        h2 = _layernorm(x, ln2_g, ln2_b).astype(jnp.bfloat16)
        m = jnp.dot(h2, fc1w_ref[l], preferred_element_type=jnp.float32) + fc1_b
        m = m * jax.nn.sigmoid(1.702 * m)                 # QuickGELU in f32
        x = x + jnp.dot(m.astype(jnp.bfloat16), fc2w_ref[l],
                        preferred_element_type=jnp.float32) + fc2_b

    o_ref[...] = x


# ---------------- deterministic parameter init ----------------
def init_params(key):
    ks = jax.random.split(key, 1 + LAYERS)
    params = {
        "conv1_w": 0.02
        * jax.random.normal(ks[0], (WIDTH, CIN, PATCH, PATCH), jnp.float32),
        "ln_pre_g": jnp.ones((WIDTH,), jnp.float32),
        "ln_pre_b": jnp.zeros((WIDTH,), jnp.float32),
    }
    blocks = []
    for l in range(LAYERS):
        kk = jax.random.split(ks[1 + l], 5)
        blocks.append(
            dict(
                ln1_g=jnp.ones((WIDTH,), jnp.float32),
                ln1_b=jnp.zeros((WIDTH,), jnp.float32),
                # stored as (in, out) == torch weight (out, in) transposed
                in_w=0.02 * jax.random.normal(kk[0], (WIDTH, 3 * WIDTH), jnp.float32),
                in_b=0.02 * jax.random.normal(kk[1], (3 * WIDTH,), jnp.float32),
                out_w=0.02 * jax.random.normal(kk[2], (WIDTH, WIDTH), jnp.float32),
                out_b=jnp.zeros((WIDTH,), jnp.float32),
                ln2_g=jnp.ones((WIDTH,), jnp.float32),
                ln2_b=jnp.zeros((WIDTH,), jnp.float32),
                fc1_w=0.02 * jax.random.normal(kk[3], (WIDTH, MLP), jnp.float32),
                fc1_b=jnp.zeros((MLP,), jnp.float32),
                fc2_w=0.02 * jax.random.normal(kk[4], (MLP, WIDTH), jnp.float32),
                fc2_b=jnp.zeros((WIDTH,), jnp.float32),
            )
        )
    params["blocks"] = blocks
    return params


# ---------------- forward pass (mirrors FeatureExtractor.forward) ----------------
def feature_extractor_forward(x, params):
    x = x.astype(jnp.float32)

    # conv1 patch extraction (plain-JAX index glue), cast to bf16 for the MXU.
    xp = x.reshape(B, CIN, GRID, PATCH, GRID, PATCH)
    xp = xp.transpose(0, 2, 4, 1, 3, 5).reshape(TOKENS, CIN * PATCH * PATCH)
    xp = xp.astype(jnp.bfloat16)
    w_patch = (params["conv1_w"].reshape(WIDTH, CIN * PATCH * PATCH).T
               .astype(jnp.bfloat16))
    ln_pre = jnp.stack([params["ln_pre_g"], params["ln_pre_b"]], axis=0)  # (2, W)

    # weight-only prep glue: scale fold, bias folds, per-layer stacking.
    in_ws, out_ws, fc1_ws, fc2_ws, vecs, fc1_bs = [], [], [], [], [], []
    q_scale = jnp.concatenate([jnp.full((WIDTH,), ATTN_SCALE, jnp.float32),
                               jnp.ones((2 * WIDTH,), jnp.float32)])
    for blk in params["blocks"]:
        in_w = blk["in_w"] * q_scale[None, :]             # fold ATTN_SCALE into wq
        bq = blk["in_b"][0 * WIDTH:1 * WIDTH] * ATTN_SCALE
        bv = blk["in_b"][2 * WIDTH:3 * WIDTH]
        out_w = blk["out_w"]
        out_b = bv @ out_w + blk["out_b"]                 # fold bv through out-proj
        in_ws.append(in_w.astype(jnp.bfloat16))
        out_ws.append(out_w.astype(jnp.bfloat16))
        fc1_ws.append(blk["fc1_w"].astype(jnp.bfloat16))
        fc2_ws.append(blk["fc2_w"].astype(jnp.bfloat16))
        vecs.append(jnp.stack([blk["ln1_g"], blk["ln1_b"], bq, out_b,
                               blk["ln2_g"], blk["ln2_b"], blk["fc2_b"]], axis=0))
        fc1_bs.append(blk["fc1_b"].reshape(1, MLP))

    args = (
        xp, w_patch, ln_pre,
        jnp.stack(in_ws), jnp.stack(out_ws), jnp.stack(fc1_ws), jnp.stack(fc2_ws),
        jnp.stack(vecs), jnp.stack(fc1_bs),
    )

    xt = pl.pallas_call(
        _model_kernel,
        out_shape=jax.ShapeDtypeStruct((TOKENS, WIDTH), jnp.float32),
        grid=(1,),
        in_specs=[pl.BlockSpec(a.shape, (lambda i, _r=a.ndim: (0,) * _r))
                  for a in args],
        out_specs=pl.BlockSpec((TOKENS, WIDTH), lambda i: (0, 0)),
        compiler_params=pltpu.CompilerParams(dimension_semantics=("arbitrary",)),
    )(*args)

    # x.view(B, H, W, C).permute(0, 3, 1, 2) -> NCHW feature map, cast to fp16
    fm = xt.reshape(B, GRID, GRID, WIDTH).transpose(0, 3, 1, 2)
    return fm.astype(jnp.float16)


if __name__ == "__main__":
    key = jax.random.PRNGKey(0)
    kx, kp = jax.random.split(key)
    x = jax.random.normal(kx, (B, CIN, IMG, IMG), jnp.float32)
    params = init_params(kp)

    fwd = jax.jit(feature_extractor_forward)
    feature_map = jax.block_until_ready(fwd(x, params))

    assert feature_map.shape == (B, WIDTH, GRID, GRID), feature_map.shape
    assert feature_map.dtype == jnp.float16
    assert bool(jnp.all(jnp.isfinite(feature_map.astype(jnp.float32))))
    print("KERNEL_OK")
</pallas_src>

<mosaic_0001>
module attributes {stable_mosaic.version = 11 : i64} {
  func.func @_model_kernel(%arg0: i32, %arg1: memref<8x192xbf16, #tpu.memory_space<vmem>>, %arg2: memref<192x32xbf16, #tpu.memory_space<vmem>>, %arg3: memref<2x32xf32, #tpu.memory_space<vmem>>, %arg4: memref<2x32x96xbf16, #tpu.memory_space<vmem>>, %arg5: memref<2x32x32xbf16, #tpu.memory_space<vmem>>, %arg6: memref<2x32x128xbf16, #tpu.memory_space<vmem>>, %arg7: memref<2x128x32xbf16, #tpu.memory_space<vmem>>, %arg8: memref<2x7x32xf32, #tpu.memory_space<vmem>>, %arg9: memref<2x1x128xf32, #tpu.memory_space<vmem>>, %arg10: memref<8x32xf32, #tpu.memory_space<vmem>>) attributes {dimension_semantics = [#tpu.dimension_semantics<arbitrary>], iteration_bounds = array<i64: 1>, scalar_prefetch = 0 : i64, scratch_operands = 0 : i64, tpu.core_type = #tpu.core_type<tc>, window_params = [{pipeline_mode = #tpu.pipeline_mode<synchronous>, transform_indices = @transform_0, window_bounds = array<i64: 8, 192>}, {pipeline_mode = #tpu.pipeline_mode<synchronous>, transform_indices = @transform_1, window_bounds = array<i64: 192, 32>}, {pipeline_mode = #tpu.pipeline_mode<synchronous>, transform_indices = @transform_2, window_bounds = array<i64: 2, 32>}, {pipeline_mode = #tpu.pipeline_mode<synchronous>, transform_indices = @transform_3, window_bounds = array<i64: 2, 32, 96>}, {pipeline_mode = #tpu.pipeline_mode<synchronous>, transform_indices = @transform_4, window_bounds = array<i64: 2, 32, 32>}, {pipeline_mode = #tpu.pipeline_mode<synchronous>, transform_indices = @transform_5, window_bounds = array<i64: 2, 32, 128>}, {pipeline_mode = #tpu.pipeline_mode<synchronous>, transform_indices = @transform_6, window_bounds = array<i64: 2, 128, 32>}, {pipeline_mode = #tpu.pipeline_mode<synchronous>, transform_indices = @transform_7, window_bounds = array<i64: 2, 7, 32>}, {pipeline_mode = #tpu.pipeline_mode<synchronous>, transform_indices = @transform_8, window_bounds = array<i64: 2, 1, 128>}, {pipeline_mode = #tpu.pipeline_mode<synchronous>, transform_indices = @transform_9, window_bounds = array<i64: 8, 32>}]} {
    %c0 = arith.constant 0 : index
    %c0_0 = arith.constant 0 : index
    %0 = vector.load %arg1[%c0, %c0_0] : memref<8x192xbf16, #tpu.memory_space<vmem>>, vector<8x192xbf16>
    %c0_1 = arith.constant 0 : index
    %c0_2 = arith.constant 0 : index
    %1 = vector.load %arg2[%c0_1, %c0_2] : memref<192x32xbf16, #tpu.memory_space<vmem>>, vector<192x32xbf16>
    %cst = arith.constant dense<0.000000e+00> : vector<8x32xf32>
    %2 = tpu.matmul %0, %1, %cst {dimension_numbers = #tpu.dot_dimension_numbers<[1], [0], [0], [1], [0, 0, 1, 1], [], []>} : vector<8x192xbf16>, vector<192x32xbf16>, vector<8x32xf32> -> vector<8x32xf32>
    %c0_3 = arith.constant 0 : index
    %c0_4 = arith.constant 0 : index
    %3 = vector.load %arg3[%c0_3, %c0_4] : memref<2x32xf32, #tpu.memory_space<vmem>>, vector<2x32xf32>
    %4 = vector.extract_strided_slice %3 {offsets = [0, 0], sizes = [1, 32], strides = [1, 1]} : vector<2x32xf32> to vector<1x32xf32>
    %5 = vector.extract_strided_slice %3 {offsets = [1, 0], sizes = [1, 32], strides = [1, 1]} : vector<2x32xf32> to vector<1x32xf32>
    %cst_5 = arith.constant dense<0.000000e+00> : vector<8xf32>
    %6 = vector.multi_reduction <add>, %2, %cst_5 [1] : vector<8x32xf32> to vector<8xf32>
    %7 = vector.shape_cast %6 : vector<8xf32> to vector<8x1xf32>
    %cst_6 = arith.constant 3.200000e+01 : f32
    %8 = vector.broadcast %cst_6 : f32 to vector<8x1xf32>
    %9 = arith.divf %7, %8 : vector<8x1xf32>
    %10 = vector.broadcast %9 : vector<8x1xf32> to vector<8x32xf32>
    %11 = arith.subf %2, %10 : vector<8x32xf32>
    %12 = arith.mulf %11, %11 : vector<8x32xf32>
    %cst_7 = arith.constant dense<0.000000e+00> : vector<8xf32>
    %13 = vector.multi_reduction <add>, %12, %cst_7 [1] : vector<8x32xf32> to vector<8xf32>
    %14 = vector.shape_cast %13 : vector<8xf32> to vector<8x1xf32>
    %cst_8 = arith.constant 3.200000e+01 : f32
    %15 = vector.broadcast %cst_8 : f32 to vector<8x1xf32>
    %16 = arith.divf %14, %15 : vector<8x1xf32>
    %17 = vector.broadcast %9 : vector<8x1xf32> to vector<8x32xf32>
    %18 = arith.subf %2, %17 : vector<8x32xf32>
    %cst_9 = arith.constant 9.99999974E-6 : f32
    %19 = vector.broadcast %cst_9 : f32 to vector<8x1xf32>
    %20 = arith.addf %16, %19 : vector<8x1xf32>
    %21 = math.rsqrt %20 : vector<8x1xf32>
    %22 = vector.broadcast %21 : vector<8x1xf32> to vector<8x32xf32>
    %23 = arith.mulf %18, %22 : vector<8x32xf32>
    %24 = vector.broadcast %4 : vector<1x32xf32> to vector<8x32xf32>
    %25 = arith.mulf %23, %24 : vector<8x32xf32>
    %26 = vector.broadcast %5 : vector<1x32xf32> to vector<8x32xf32>
    %27 = arith.addf %25, %26 : vector<8x32xf32>
    %28 = tpu.iota {dimensions = array<i32: 0>} : vector<8x8xi32>
    %29 = tpu.iota {dimensions = array<i32: 1>} : vector<8x8xi32>
    %c4_i32 = arith.constant 4 : i32
    %c0_i32 = arith.constant 0 : i32
    %30 = arith.cmpi eq, %c4_i32, %c0_i32 : i32
    %c1_i32 = arith.constant 1 : i32
    %31 = arith.select %30, %c1_i32, %c4_i32 : i32
    %32 = vector.broadcast %31 : i32 to vector<8x8xi32>
    %33 = arith.remsi %28, %32 : vector<8x8xi32>
    %c0_i32_10 = arith.constant 0 : i32
    %34 = vector.broadcast %c0_i32_10 : i32 to vector<8x8xi32>
    %35 = arith.cmpi ne, %33, %34 : vector<8x8xi32>
    %c0_i32_11 = arith.constant 0 : i32
    %36 = vector.broadcast %c0_i32_11 : i32 to vector<8x8xi32>
    %37 = arith.cmpi slt, %33, %36 : vector<8x8xi32>
    %c0_i32_12 = arith.constant 0 : i32
    %38 = arith.cmpi slt, %31, %c0_i32_12 : i32
    %39 = vector.broadcast %38 : i1 to vector<8x8xi1>
    %40 = vector.broadcast %39 : vector<8x8xi1> to vector<8x8xi1>
    %41 = arith.xori %37, %40 : vector<8x8xi1>
    %42 = arith.andi %41, %35 : vector<8x8xi1>
    %43 = vector.broadcast %31 : i32 to vector<8x8xi32>
    %44 = arith.addi %33, %43 : vector<8x8xi32>
    %45 = arith.select %42, %44, %33 : vector<8x8xi1>, vector<8x8xi32>
    %c4_i32_13 = arith.constant 4 : i32
    %c0_i32_14 = arith.constant 0 : i32
    %46 = arith.cmpi eq, %c4_i32_13, %c0_i32_14 : i32
    %c1_i32_15 = arith.constant 1 : i32
    %47 = arith.select %46, %c1_i32_15, %c4_i32_13 : i32
    %48 = vector.broadcast %47 : i32 to vector<8x8xi32>
    %49 = arith.remsi %29, %48 : vector<8x8xi32>
    %c0_i32_16 = arith.constant 0 : i32
    %50 = vector.broadcast %c0_i32_16 : i32 to vector<8x8xi32>
    %51 = arith.cmpi ne, %49, %50 : vector<8x8xi32>
    %c0_i32_17 = arith.constant 0 : i32
    %52 = vector.broadcast %c0_i32_17 : i32 to vector<8x8xi32>
    %53 = arith.cmpi slt, %49, %52 : vector<8x8xi32>
    %c0_i32_18 = arith.constant 0 : i32
    %54 = arith.cmpi slt, %47, %c0_i32_18 : i32
    %55 = vector.broadcast %54 : i1 to vector<8x8xi1>
    %56 = vector.broadcast %55 : vector<8x8xi1> to vector<8x8xi1>
    %57 = arith.xori %53, %56 : vector<8x8xi1>
    %58 = arith.andi %57, %51 : vector<8x8xi1>
    %59 = vector.broadcast %47 : i32 to vector<8x8xi32>
    %60 = arith.addi %49, %59 : vector<8x8xi32>
    %61 = arith.select %58, %60, %49 : vector<8x8xi1>, vector<8x8xi32>
    %62 = arith.cmpi eq, %45, %61 : vector<8x8xi32>
    %cst_19 = arith.constant 0.000000e+00 : f32
    %cst_20 = arith.constant -1.000000e+30 : f32
    %63 = vector.broadcast %cst_19 : f32 to vector<8x8xf32>
    %64 = vector.broadcast %cst_20 : f32 to vector<8x8xf32>
    %65 = arith.select %62, %63, %64 : vector<8x8xi1>, vector<8x8xf32>
    %c0_21 = arith.constant 0 : index
    %c0_22 = arith.constant 0 : index
    %c0_23 = arith.constant 0 : index
    %66 = vector.load %arg8[%c0_21, %c0_22, %c0_23] : memref<2x7x32xf32, #tpu.memory_space<vmem>>, vector<1x7x32xf32>
    %67 = vector.shape_cast %66 : vector<1x7x32xf32> to vector<7x32xf32>
    %68 = vector.extract_strided_slice %67 {offsets = [0, 0], sizes = [1, 32], strides = [1, 1]} : vector<7x32xf32> to vector<1x32xf32>
    %69 = vector.extract_strided_slice %67 {offsets = [1, 0], sizes = [1, 32], strides = [1, 1]} : vector<7x32xf32> to vector<1x32xf32>
    %70 = vector.extract_strided_slice %67 {offsets = [2, 0], sizes = [1, 32], strides = [1, 1]} : vector<7x32xf32> to vector<1x32xf32>
    %71 = vector.extract_strided_slice %67 {offsets = [3, 0], sizes = [1, 32], strides = [1, 1]} : vector<7x32xf32> to vector<1x32xf32>
    %72 = vector.extract_strided_slice %67 {offsets = [4, 0], sizes = [1, 32], strides = [1, 1]} : vector<7x32xf32> to vector<1x32xf32>
    %73 = vector.extract_strided_slice %67 {offsets = [5, 0], sizes = [1, 32], strides = [1, 1]} : vector<7x32xf32> to vector<1x32xf32>
    %74 = vector.extract_strided_slice %67 {offsets = [6, 0], sizes = [1, 32], strides = [1, 1]} : vector<7x32xf32> to vector<1x32xf32>
    %c0_24 = arith.constant 0 : index
    %c0_25 = arith.constant 0 : index
    %c0_26 = arith.constant 0 : index
    %75 = vector.load %arg9[%c0_24, %c0_25, %c0_26] : memref<2x1x128xf32, #tpu.memory_space<vmem>>, vector<1x1x128xf32>
    %76 = vector.shape_cast %75 : vector<1x1x128xf32> to vector<1x128xf32>
    %cst_27 = arith.constant dense<0.000000e+00> : vector<8xf32>
    %77 = vector.multi_reduction <add>, %27, %cst_27 [1] : vector<8x32xf32> to vector<8xf32>
    %78 = vector.shape_cast %77 : vector<8xf32> to vector<8x1xf32>
    %cst_28 = arith.constant 3.200000e+01 : f32
    %79 = vector.broadcast %cst_28 : f32 to vector<8x1xf32>
    %80 = arith.divf %78, %79 : vector<8x1xf32>
    %81 = vector.broadcast %80 : vector<8x1xf32> to vector<8x32xf32>
    %82 = arith.subf %27, %81 : vector<8x32xf32>
    %83 = arith.mulf %82, %82 : vector<8x32xf32>
    %cst_29 = arith.constant dense<0.000000e+00> : vector<8xf32>
    %84 = vector.multi_reduction <add>, %83, %cst_29 [1] : vector<8x32xf32> to vector<8xf32>
    %85 = vector.shape_cast %84 : vector<8xf32> to vector<8x1xf32>
    %cst_30 = arith.constant 3.200000e+01 : f32
    %86 = vector.broadcast %cst_30 : f32 to vector<8x1xf32>
    %87 = arith.divf %85, %86 : vector<8x1xf32>
    %88 = vector.broadcast %80 : vector<8x1xf32> to vector<8x32xf32>
    %89 = arith.subf %27, %88 : vector<8x32xf32>
    %cst_31 = arith.constant 9.99999974E-6 : f32
    %90 = vector.broadcast %cst_31 : f32 to vector<8x1xf32>
    %91 = arith.addf %87, %90 : vector<8x1xf32>
    %92 = math.rsqrt %91 : vector<8x1xf32>
    %93 = vector.broadcast %92 : vector<8x1xf32> to vector<8x32xf32>
    %94 = arith.mulf %89, %93 : vector<8x32xf32>
    %95 = vector.broadcast %68 : vector<1x32xf32> to vector<8x32xf32>
    %96 = arith.mulf %94, %95 : vector<8x32xf32>
    %97 = vector.broadcast %69 : vector<1x32xf32> to vector<8x32xf32>
    %98 = arith.addf %96, %97 : vector<8x32xf32>
    %99 = arith.truncf %98 : vector<8x32xf32> to vector<8x32xbf16>
    %c0_32 = arith.constant 0 : index
    %c0_33 = arith.constant 0 : index
    %c0_34 = arith.constant 0 : index
    %100 = vector.load %arg4[%c0_32, %c0_33, %c0_34] : memref<2x32x96xbf16, #tpu.memory_space<vmem>>, vector<1x32x96xbf16>
    %101 = vector.shape_cast %100 : vector<1x32x96xbf16> to vector<32x96xbf16>
    %cst_35 = arith.constant dense<0.000000e+00> : vector<8x96xf32>
    %102 = tpu.matmul %99, %101, %cst_35 {dimension_numbers = #tpu.dot_dimension_numbers<[1], [0], [0], [1], [0, 0, 1, 1], [], []>} : vector<8x32xbf16>, vector<32x96xbf16>, vector<8x96xf32> -> vector<8x96xf32>
    %103 = vector.extract_strided_slice %102 {offsets = [0, 0], sizes = [8, 32], strides = [1, 1]} : vector<8x96xf32> to vector<8x32xf32>
    %104 = vector.broadcast %70 : vector<1x32xf32> to vector<8x32xf32>
    %105 = arith.addf %103, %104 : vector<8x32xf32>
    %106 = arith.truncf %105 : vector<8x32xf32> to vector<8x32xbf16>
    %107 = vector.extract_strided_slice %102 {offsets = [0, 32], sizes = [8, 32], strides = [1, 1]} : vector<8x96xf32> to vector<8x32xf32>
    %108 = arith.truncf %107 : vector<8x32xf32> to vector<8x32xbf16>
    %109 = vector.extract_strided_slice %102 {offsets = [0, 64], sizes = [8, 32], strides = [1, 1]} : vector<8x96xf32> to vector<8x32xf32>
    %110 = arith.truncf %109 : vector<8x32xf32> to vector<8x32xbf16>
    %111 = vector.extract_strided_slice %106 {offsets = [0, 0], sizes = [8, 8], strides = [1, 1]} : vector<8x32xbf16> to vector<8x8xbf16>
    %112 = vector.extract_strided_slice %108 {offsets = [0, 0], sizes = [8, 8], strides = [1, 1]} : vector<8x32xbf16> to vector<8x8xbf16>
    %cst_36 = arith.constant dense<0.000000e+00> : vector<8x8xf32>
    %113 = tpu.matmul %111, %112, %cst_36 {dimension_numbers = #tpu.dot_dimension_numbers<[1], [1], [0], [0], [0, 0, 1, 0], [], []>} : vector<8x8xbf16>, vector<8x8xbf16>, vector<8x8xf32> -> vector<8x8xf32>
    %114 = arith.addf %113, %65 : vector<8x8xf32>
    %cst_37 = arith.constant dense<0xFF800000> : vector<8xf32>
    %115 = vector.multi_reduction <maximumf>, %114, %cst_37 [1] : vector<8x8xf32> to vector<8xf32>
    %116 = vector.shape_cast %115 : vector<8xf32> to vector<8x1xf32>
    %117 = vector.broadcast %116 : vector<8x1xf32> to vector<8x8xf32>
    %118 = arith.subf %114, %117 : vector<8x8xf32>
    %119 = math.exp %118 : vector<8x8xf32>
    %cst_38 = arith.constant dense<0.000000e+00> : vector<8xf32>
    %120 = vector.multi_reduction <add>, %119, %cst_38 [1] : vector<8x8xf32> to vector<8xf32>
    %121 = vector.shape_cast %120 : vector<8xf32> to vector<8x1xf32>
    %122 = tpu.reciprocal %121 {approx = true} : vector<8x1xf32> -> vector<8x1xf32>
    %123 = vector.broadcast %122 : vector<8x1xf32> to vector<8x8xf32>
    %124 = arith.mulf %119, %123 : vector<8x8xf32>
    %125 = arith.truncf %124 : vector<8x8xf32> to vector<8x8xbf16>
    %126 = vector.extract_strided_slice %110 {offsets = [0, 0], sizes = [8, 8], strides = [1, 1]} : vector<8x32xbf16> to vector<8x8xbf16>
    %cst_39 = arith.constant dense<0.000000e+00> : vector<8x8xf32>
    %127 = tpu.matmul %125, %126, %cst_39 {dimension_numbers = #tpu.dot_dimension_numbers<[1], [0], [0], [1], [0, 0, 1, 1], [], []>} : vector<8x8xbf16>, vector<8x8xbf16>, vector<8x8xf32> -> vector<8x8xf32>
    %128 = vector.extract_strided_slice %106 {offsets = [0, 8], sizes = [8, 8], strides = [1, 1]} : vector<8x32xbf16> to vector<8x8xbf16>
    %129 = vector.extract_strided_slice %108 {offsets = [0, 8], sizes = [8, 8], strides = [1, 1]} : vector<8x32xbf16> to vector<8x8xbf16>
    %cst_40 = arith.constant dense<0.000000e+00> : vector<8x8xf32>
    %130 = tpu.matmul %128, %129, %cst_40 {dimension_numbers = #tpu.dot_dimension_numbers<[1], [1], [0], [0], [0, 0, 1, 0], [], []>} : vector<8x8xbf16>, vector<8x8xbf16>, vector<8x8xf32> -> vector<8x8xf32>
    %131 = arith.addf %130, %65 : vector<8x8xf32>
    %cst_41 = arith.constant dense<0xFF800000> : vector<8xf32>
    %132 = vector.multi_reduction <maximumf>, %131, %cst_41 [1] : vector<8x8xf32> to vector<8xf32>
    %133 = vector.shape_cast %132 : vector<8xf32> to vector<8x1xf32>
    %134 = vector.broadcast %133 : vector<8x1xf32> to vector<8x8xf32>
    %135 = arith.subf %131, %134 : vector<8x8xf32>
    %136 = math.exp %135 : vector<8x8xf32>
    %cst_42 = arith.constant dense<0.000000e+00> : vector<8xf32>
    %137 = vector.multi_reduction <add>, %136, %cst_42 [1] : vector<8x8xf32> to vector<8xf32>
    %138 = vector.shape_cast %137 : vector<8xf32> to vector<8x1xf32>
    %139 = tpu.reciprocal %138 {approx = true} : vector<8x1xf32> -> vector<8x1xf32>
    %140 = vector.broadcast %139 : vector<8x1xf32> to vector<8x8xf32>
    %141 = arith.mulf %136, %140 : vector<8x8xf32>
    %142 = arith.truncf %141 : vector<8x8xf32> to vector<8x8xbf16>
    %143 = vector.extract_strided_slice %110 {offsets = [0, 8], sizes = [8, 8], strides = [1, 1]} : vector<8x32xbf16> to vector<8x8xbf16>
    %cst_43 = arith.constant dense<0.000000e+00> : vector<8x8xf32>
    %144 = tpu.matmul %142, %143, %cst_43 {dimension_numbers = #tpu.dot_dimension_numbers<[1], [0], [0], [1], [0, 0, 1, 1], [], []>} : vector<8x8xbf16>, vector<8x8xbf16>, vector<8x8xf32> -> vector<8x8xf32>
    %145 = vector.extract_strided_slice %106 {offsets = [0, 16], sizes = [8, 8], strides = [1, 1]} : vector<8x32xbf16> to vector<8x8xbf16>
    %146 = vector.extract_strided_slice %108 {offsets = [0, 16], sizes = [8, 8], strides = [1, 1]} : vector<8x32xbf16> to vector<8x8xbf16>
    %cst_44 = arith.constant dense<0.000000e+00> : vector<8x8xf32>
    %147 = tpu.matmul %145, %146, %cst_44 {dimension_numbers = #tpu.dot_dimension_numbers<[1], [1], [0], [0], [0, 0, 1, 0], [], []>} : vector<8x8xbf16>, vector<8x8xbf16>, vector<8x8xf32> -> vector<8x8xf32>
    %148 = arith.addf %147, %65 : vector<8x8xf32>
    %cst_45 = arith.constant dense<0xFF800000> : vector<8xf32>
    %149 = vector.multi_reduction <maximumf>, %148, %cst_45 [1] : vector<8x8xf32> to vector<8xf32>
    %150 = vector.shape_cast %149 : vector<8xf32> to vector<8x1xf32>
    %151 = vector.broadcast %150 : vector<8x1xf32> to vector<8x8xf32>
    %152 = arith.subf %148, %151 : vector<8x8xf32>
    %153 = math.exp %152 : vector<8x8xf32>
    %cst_46 = arith.constant dense<0.000000e+00> : vector<8xf32>
    %154 = vector.multi_reduction <add>, %153, %cst_46 [1] : vector<8x8xf32> to vector<8xf32>
    %155 = vector.shape_cast %154 : vector<8xf32> to vector<8x1xf32>
    %156 = tpu.reciprocal %155 {approx = true} : vector<8x1xf32> -> vector<8x1xf32>
    %157 = vector.broadcast %156 : vector<8x1xf32> to vector<8x8xf32>
    %158 = arith.mulf %153, %157 : vector<8x8xf32>
    %159 = arith.truncf %158 : vector<8x8xf32> to vector<8x8xbf16>
    %160 = vector.extract_strided_slice %110 {offsets = [0, 16], sizes = [8, 8], strides = [1, 1]} : vector<8x32xbf16> to vector<8x8xbf16>
    %cst_47 = arith.constant dense<0.000000e+00> : vector<8x8xf32>
    %161 = tpu.matmul %159, %160, %cst_47 {dimension_numbers = #tpu.dot_dimension_numbers<[1], [0], [0], [1], [0, 0, 1, 1], [], []>} : vector<8x8xbf16>, vector<8x8xbf16>, vector<8x8xf32> -> vector<8x8xf32>
    %162 = vector.extract_strided_slice %106 {offsets = [0, 24], sizes = [8, 8], strides = [1, 1]} : vector<8x32xbf16> to vector<8x8xbf16>
    %163 = vector.extract_strided_slice %108 {offsets = [0, 24], sizes = [8, 8], strides = [1, 1]} : vector<8x32xbf16> to vector<8x8xbf16>
    %cst_48 = arith.constant dense<0.000000e+00> : vector<8x8xf32>
    %164 = tpu.matmul %162, %163, %cst_48 {dimension_numbers = #tpu.dot_dimension_numbers<[1], [1], [0], [0], [0, 0, 1, 0], [], []>} : vector<8x8xbf16>, vector<8x8xbf16>, vector<8x8xf32> -> vector<8x8xf32>
    %165 = arith.addf %164, %65 : vector<8x8xf32>
    %cst_49 = arith.constant dense<0xFF800000> : vector<8xf32>
    %166 = vector.multi_reduction <maximumf>, %165, %cst_49 [1] : vector<8x8xf32> to vector<8xf32>
    %167 = vector.shape_cast %166 : vector<8xf32> to vector<8x1xf32>
    %168 = vector.broadcast %167 : vector<8x1xf32> to vector<8x8xf32>
    %169 = arith.subf %165, %168 : vector<8x8xf32>
    %170 = math.exp %169 : vector<8x8xf32>
    %cst_50 = arith.constant dense<0.000000e+00> : vector<8xf32>
    %171 = vector.multi_reduction <add>, %170, %cst_50 [1] : vector<8x8xf32> to vector<8xf32>
    %172 = vector.shape_cast %171 : vector<8xf32> to vector<8x1xf32>
    %173 = tpu.reciprocal %172 {approx = true} : vector<8x1xf32> -> vector<8x1xf32>
    %174 = vector.broadcast %173 : vector<8x1xf32> to vector<8x8xf32>
    %175 = arith.mulf %170, %174 : vector<8x8xf32>
    %176 = arith.truncf %175 : vector<8x8xf32> to vector<8x8xbf16>
    %177 = vector.extract_strided_slice %110 {offsets = [0, 24], sizes = [8, 8], strides = [1, 1]} : vector<8x32xbf16> to vector<8x8xbf16>
    %cst_51 = arith.constant dense<0.000000e+00> : vector<8x8xf32>
    %178 = tpu.matmul %176, %177, %cst_51 {dimension_numbers = #tpu.dot_dimension_numbers<[1], [0], [0], [1], [0, 0, 1, 1], [], []>} : vector<8x8xbf16>, vector<8x8xbf16>, vector<8x8xf32> -> vector<8x8xf32>
    %179 = tpu.concatenate %127, %144, %161, %178 in 1 : vector<8x8xf32>, vector<8x8xf32>, vector<8x8xf32>, vector<8x8xf32> -> vector<8x32xf32>
    %180 = arith.truncf %179 : vector<8x32xf32> to vector<8x32xbf16>
    %c0_52 = arith.constant 0 : index
    %c0_53 = arith.constant 0 : index
    %c0_54 = arith.constant 0 : index
    %181 = vector.load %arg5[%c0_52, %c0_53, %c0_54] : memref<2x32x32xbf16, #tpu.memory_space<vmem>>, vector<1x32x32xbf16>
    %182 = vector.shape_cast %181 : vector<1x32x32xbf16> to vector<32x32xbf16>
    %cst_55 = arith.constant dense<0.000000e+00> : vector<8x32xf32>
    %183 = tpu.matmul %180, %182, %cst_55 {dimension_numbers = #tpu.dot_dimension_numbers<[1], [0], [0], [1], [0, 0, 1, 1], [], []>} : vector<8x32xbf16>, vector<32x32xbf16>, vector<8x32xf32> -> vector<8x32xf32>
    %184 = arith.addf %27, %183 : vector<8x32xf32>
    %185 = vector.broadcast %71 : vector<1x32xf32> to vector<8x32xf32>
    %186 = arith.addf %184, %185 : vector<8x32xf32>
    %cst_56 = arith.constant dense<0.000000e+00> : vector<8xf32>
    %187 = vector.multi_reduction <add>, %186, %cst_56 [1] : vector<8x32xf32> to vector<8xf32>
    %188 = vector.shape_cast %187 : vector<8xf32> to vector<8x1xf32>
    %cst_57 = arith.constant 3.200000e+01 : f32
    %189 = vector.broadcast %cst_57 : f32 to vector<8x1xf32>
    %190 = arith.divf %188, %189 : vector<8x1xf32>
    %191 = vector.broadcast %190 : vector<8x1xf32> to vector<8x32xf32>
    %192 = arith.subf %186, %191 : vector<8x32xf32>
    %193 = arith.mulf %192, %192 : vector<8x32xf32>
    %cst_58 = arith.constant dense<0.000000e+00> : vector<8xf32>
    %194 = vector.multi_reduction <add>, %193, %cst_58 [1] : vector<8x32xf32> to vector<8xf32>
    %195 = vector.shape_cast %194 : vector<8xf32> to vector<8x1xf32>
    %cst_59 = arith.constant 3.200000e+01 : f32
    %196 = vector.broadcast %cst_59 : f32 to vector<8x1xf32>
    %197 = arith.divf %195, %196 : vector<8x1xf32>
    %198 = vector.broadcast %190 : vector<8x1xf32> to vector<8x32xf32>
    %199 = arith.subf %186, %198 : vector<8x32xf32>
    %cst_60 = arith.constant 9.99999974E-6 : f32
    %200 = vector.broadcast %cst_60 : f32 to vector<8x1xf32>
    %201 = arith.addf %197, %200 : vector<8x1xf32>
    %202 = math.rsqrt %201 : vector<8x1xf32>
    %203 = vector.broadcast %202 : vector<8x1xf32> to vector<8x32xf32>
    %204 = arith.mulf %199, %203 : vector<8x32xf32>
    %205 = vector.broadcast %72 : vector<1x32xf32> to vector<8x32xf32>
    %206 = arith.mulf %204, %205 : vector<8x32xf32>
    %207 = vector.broadcast %73 : vector<1x32xf32> to vector<8x32xf32>
    %208 = arith.addf %206, %207 : vector<8x32xf32>
    %209 = arith.truncf %208 : vector<8x32xf32> to vector<8x32xbf16>
    %c0_61 = arith.constant 0 : index
    %c0_62 = arith.constant 0 : index
    %c0_63 = arith.constant 0 : index
    %210 = vector.load %arg6[%c0_61, %c0_62, %c0_63] : memref<2x32x128xbf16, #tpu.memory_space<vmem>>, vector<1x32x128xbf16>
    %211 = vector.shape_cast %210 : vector<1x32x128xbf16> to vector<32x128xbf16>
    %cst_64 = arith.constant dense<0.000000e+00> : vector<8x128xf32>
    %212 = tpu.matmul %209, %211, %cst_64 {dimension_numbers = #tpu.dot_dimension_numbers<[1], [0], [0], [1], [0, 0, 1, 1], [], []>} : vector<8x32xbf16>, vector<32x128xbf16>, vector<8x128xf32> -> vector<8x128xf32>
    %213 = vector.broadcast %76 : vector<1x128xf32> to vector<8x128xf32>
    %214 = arith.addf %212, %213 : vector<8x128xf32>
    %cst_65 = arith.constant 1.702000e+00 : f32
    %215 = vector.broadcast %cst_65 : f32 to vector<8x128xf32>
    %216 = arith.mulf %215, %214 : vector<8x128xf32>
    %217 = arith.negf %216 : vector<8x128xf32>
    %218 = math.exp %217 : vector<8x128xf32>
    %cst_66 = arith.constant 1.000000e+00 : f32
    %219 = vector.broadcast %cst_66 : f32 to vector<8x128xf32>
    %220 = arith.addf %219, %218 : vector<8x128xf32>
    %221 = arith.divf %219, %220 : vector<8x128xf32>
    %222 = arith.mulf %214, %221 : vector<8x128xf32>
    %223 = arith.truncf %222 : vector<8x128xf32> to vector<8x128xbf16>
    %c0_67 = arith.constant 0 : index
    %c0_68 = arith.constant 0 : index
    %c0_69 = arith.constant 0 : index
    %224 = vector.load %arg7[%c0_67, %c0_68, %c0_69] : memref<2x128x32xbf16, #tpu.memory_space<vmem>>, vector<1x128x32xbf16>
    %225 = vector.shape_cast %224 : vector<1x128x32xbf16> to vector<128x32xbf16>
    %cst_70 = arith.constant dense<0.000000e+00> : vector<8x32xf32>
    %226 = tpu.matmul %223, %225, %cst_70 {dimension_numbers = #tpu.dot_dimension_numbers<[1], [0], [0], [1], [0, 0, 1, 1], [], []>} : vector<8x128xbf16>, vector<128x32xbf16>, vector<8x32xf32> -> vector<8x32xf32>
    %227 = arith.addf %186, %226 : vector<8x32xf32>
    %228 = vector.broadcast %74 : vector<1x32xf32> to vector<8x32xf32>
    %229 = arith.addf %227, %228 : vector<8x32xf32>
    %c1 = arith.constant 1 : index
    %c0_71 = arith.constant 0 : index
    %c0_72 = arith.constant 0 : index
    %230 = vector.load %arg8[%c1, %c0_71, %c0_72] : memref<2x7x32xf32, #tpu.memory_space<vmem>>, vector<1x7x32xf32>
    %231 = vector.shape_cast %230 : vector<1x7x32xf32> to vector<7x32xf32>
    %232 = vector.extract_strided_slice %231 {offsets = [0, 0], sizes = [1, 32], strides = [1, 1]} : vector<7x32xf32> to vector<1x32xf32>
    %233 = vector.extract_strided_slice %231 {offsets = [1, 0], sizes = [1, 32], strides = [1, 1]} : vector<7x32xf32> to vector<1x32xf32>
    %234 = vector.extract_strided_slice %231 {offsets = [2, 0], sizes = [1, 32], strides = [1, 1]} : vector<7x32xf32> to vector<1x32xf32>
    %235 = vector.extract_strided_slice %231 {offsets = [3, 0], sizes = [1, 32], strides = [1, 1]} : vector<7x32xf32> to vector<1x32xf32>
    %236 = vector.extract_strided_slice %231 {offsets = [4, 0], sizes = [1, 32], strides = [1, 1]} : vector<7x32xf32> to vector<1x32xf32>
    %237 = vector.extract_strided_slice %231 {offsets = [5, 0], sizes = [1, 32], strides = [1, 1]} : vector<7x32xf32> to vector<1x32xf32>
    %238 = vector.extract_strided_slice %231 {offsets = [6, 0], sizes = [1, 32], strides = [1, 1]} : vector<7x32xf32> to vector<1x32xf32>
    %c1_73 = arith.constant 1 : index
    %c0_74 = arith.constant 0 : index
    %c0_75 = arith.constant 0 : index
    %239 = vector.load %arg9[%c1_73, %c0_74, %c0_75] : memref<2x1x128xf32, #tpu.memory_space<vmem>>, vector<1x1x128xf32>
    %240 = vector.shape_cast %239 : vector<1x1x128xf32> to vector<1x128xf32>
    %cst_76 = arith.constant dense<0.000000e+00> : vector<8xf32>
    %241 = vector.multi_reduction <add>, %229, %cst_76 [1] : vector<8x32xf32> to vector<8xf32>
    %242 = vector.shape_cast %241 : vector<8xf32> to vector<8x1xf32>
    %cst_77 = arith.constant 3.200000e+01 : f32
    %243 = vector.broadcast %cst_77 : f32 to vector<8x1xf32>
    %244 = arith.divf %242, %243 : vector<8x1xf32>
    %245 = vector.broadcast %244 : vector<8x1xf32> to vector<8x32xf32>
    %246 = arith.subf %229, %245 : vector<8x32xf32>
    %247 = arith.mulf %246, %246 : vector<8x32xf32>
    %cst_78 = arith.constant dense<0.000000e+00> : vector<8xf32>
    %248 = vector.multi_reduction <add>, %247, %cst_78 [1] : vector<8x32xf32> to vector<8xf32>
    %249 = vector.shape_cast %248 : vector<8xf32> to vector<8x1xf32>
    %cst_79 = arith.constant 3.200000e+01 : f32
    %250 = vector.broadcast %cst_79 : f32 to vector<8x1xf32>
    %251 = arith.divf %249, %250 : vector<8x1xf32>
    %252 = vector.broadcast %244 : vector<8x1xf32> to vector<8x32xf32>
    %253 = arith.subf %229, %252 : vector<8x32xf32>
    %cst_80 = arith.constant 9.99999974E-6 : f32
    %254 = vector.broadcast %cst_80 : f32 to vector<8x1xf32>
    %255 = arith.addf %251, %254 : vector<8x1xf32>
    %256 = math.rsqrt %255 : vector<8x1xf32>
    %257 = vector.broadcast %256 : vector<8x1xf32> to vector<8x32xf32>
    %258 = arith.mulf %253, %257 : vector<8x32xf32>
    %259 = vector.broadcast %232 : vector<1x32xf32> to vector<8x32xf32>
    %260 = arith.mulf %258, %259 : vector<8x32xf32>
    %261 = vector.broadcast %233 : vector<1x32xf32> to vector<8x32xf32>
    %262 = arith.addf %260, %261 : vector<8x32xf32>
    %263 = arith.truncf %262 : vector<8x32xf32> to vector<8x32xbf16>
    %c1_81 = arith.constant 1 : index
    %c0_82 = arith.constant 0 : index
    %c0_83 = arith.constant 0 : index
    %264 = vector.load %arg4[%c1_81, %c0_82, %c0_83] : memref<2x32x96xbf16, #tpu.memory_space<vmem>>, vector<1x32x96xbf16>
    %265 = vector.shape_cast %264 : vector<1x32x96xbf16> to vector<32x96xbf16>
    %cst_84 = arith.constant dense<0.000000e+00> : vector<8x96xf32>
    %266 = tpu.matmul %263, %265, %cst_84 {dimension_numbers = #tpu.dot_dimension_numbers<[1], [0], [0], [1], [0, 0, 1, 1], [], []>} : vector<8x32xbf16>, vector<32x96xbf16>, vector<8x96xf32> -> vector<8x96xf32>
    %267 = vector.extract_strided_slice %266 {offsets = [0, 0], sizes = [8, 32], strides = [1, 1]} : vector<8x96xf32> to vector<8x32xf32>
    %268 = vector.broadcast %234 : vector<1x32xf32> to vector<8x32xf32>
    %269 = arith.addf %267, %268 : vector<8x32xf32>
    %270 = arith.truncf %269 : vector<8x32xf32> to vector<8x32xbf16>
    %271 = vector.extract_strided_slice %266 {offsets = [0, 32], sizes = [8, 32], strides = [1, 1]} : vector<8x96xf32> to vector<8x32xf32>
    %272 = arith.truncf %271 : vector<8x32xf32> to vector<8x32xbf16>
    %273 = vector.extract_strided_slice %266 {offsets = [0, 64], sizes = [8, 32], strides = [1, 1]} : vector<8x96xf32> to vector<8x32xf32>
    %274 = arith.truncf %273 : vector<8x32xf32> to vector<8x32xbf16>
    %275 = vector.extract_strided_slice %270 {offsets = [0, 0], sizes = [8, 8], strides = [1, 1]} : vector<8x32xbf16> to vector<8x8xbf16>
    %276 = vector.extract_strided_slice %272 {offsets = [0, 0], sizes = [8, 8], strides = [1, 1]} : vector<8x32xbf16> to vector<8x8xbf16>
    %cst_85 = arith.constant dense<0.000000e+00> : vector<8x8xf32>
    %277 = tpu.matmul %275, %276, %cst_85 {dimension_numbers = #tpu.dot_dimension_numbers<[1], [1], [0], [0], [0, 0, 1, 0], [], []>} : vector<8x8xbf16>, vector<8x8xbf16>, vector<8x8xf32> -> vector<8x8xf32>
    %278 = arith.addf %277, %65 : vector<8x8xf32>
    %cst_86 = arith.constant dense<0xFF800000> : vector<8xf32>
    %279 = vector.multi_reduction <maximumf>, %278, %cst_86 [1] : vector<8x8xf32> to vector<8xf32>
    %280 = vector.shape_cast %279 : vector<8xf32> to vector<8x1xf32>
    %281 = vector.broadcast %280 : vector<8x1xf32> to vector<8x8xf32>
    %282 = arith.subf %278, %281 : vector<8x8xf32>
    %283 = math.exp %282 : vector<8x8xf32>
    %cst_87 = arith.constant dense<0.000000e+00> : vector<8xf32>
    %284 = vector.multi_reduction <add>, %283, %cst_87 [1] : vector<8x8xf32> to vector<8xf32>
    %285 = vector.shape_cast %284 : vector<8xf32> to vector<8x1xf32>
    %286 = tpu.reciprocal %285 {approx = true} : vector<8x1xf32> -> vector<8x1xf32>
    %287 = vector.broadcast %286 : vector<8x1xf32> to vector<8x8xf32>
    %288 = arith.mulf %283, %287 : vector<8x8xf32>
    %289 = arith.truncf %288 : vector<8x8xf32> to vector<8x8xbf16>
    %290 = vector.extract_strided_slice %274 {offsets = [0, 0], sizes = [8, 8], strides = [1, 1]} : vector<8x32xbf16> to vector<8x8xbf16>
    %cst_88 = arith.constant dense<0.000000e+00> : vector<8x8xf32>
    %291 = tpu.matmul %289, %290, %cst_88 {dimension_numbers = #tpu.dot_dimension_numbers<[1], [0], [0], [1], [0, 0, 1, 1], [], []>} : vector<8x8xbf16>, vector<8x8xbf16>, vector<8x8xf32> -> vector<8x8xf32>
    %292 = vector.extract_strided_slice %270 {offsets = [0, 8], sizes = [8, 8], strides = [1, 1]} : vector<8x32xbf16> to vector<8x8xbf16>
    %293 = vector.extract_strided_slice %272 {offsets = [0, 8], sizes = [8, 8], strides = [1, 1]} : vector<8x32xbf16> to vector<8x8xbf16>
    %cst_89 = arith.constant dense<0.000000e+00> : vector<8x8xf32>
    %294 = tpu.matmul %292, %293, %cst_89 {dimension_numbers = #tpu.dot_dimension_numbers<[1], [1], [0], [0], [0, 0, 1, 0], [], []>} : vector<8x8xbf16>, vector<8x8xbf16>, vector<8x8xf32> -> vector<8x8xf32>
    %295 = arith.addf %294, %65 : vector<8x8xf32>
    %cst_90 = arith.constant dense<0xFF800000> : vector<8xf32>
    %296 = vector.multi_reduction <maximumf>, %295, %cst_90 [1] : vector<8x8xf32> to vector<8xf32>
    %297 = vector.shape_cast %296 : vector<8xf32> to vector<8x1xf32>
    %298 = vector.broadcast %297 : vector<8x1xf32> to vector<8x8xf32>
    %299 = arith.subf %295, %298 : vector<8x8xf32>
    %300 = math.exp %299 : vector<8x8xf32>
    %cst_91 = arith.constant dense<0.000000e+00> : vector<8xf32>
    %301 = vector.multi_reduction <add>, %300, %cst_91 [1] : vector<8x8xf32> to vector<8xf32>
    %302 = vector.shape_cast %301 : vector<8xf32> to vector<8x1xf32>
    %303 = tpu.reciprocal %302 {approx = true} : vector<8x1xf32> -> vector<8x1xf32>
    %304 = vector.broadcast %303 : vector<8x1xf32> to vector<8x8xf32>
    %305 = arith.mulf %300, %304 : vector<8x8xf32>
    %306 = arith.truncf %305 : vector<8x8xf32> to vector<8x8xbf16>
    %307 = vector.extract_strided_slice %274 {offsets = [0, 8], sizes = [8, 8], strides = [1, 1]} : vector<8x32xbf16> to vector<8x8xbf16>
    %cst_92 = arith.constant dense<0.000000e+00> : vector<8x8xf32>
    %308 = tpu.matmul %306, %307, %cst_92 {dimension_numbers = #tpu.dot_dimension_numbers<[1], [0], [0], [1], [0, 0, 1, 1], [], []>} : vector<8x8xbf16>, vector<8x8xbf16>, vector<8x8xf32> -> vector<8x8xf32>
    %309 = vector.extract_strided_slice %270 {offsets = [0, 16], sizes = [8, 8], strides = [1, 1]} : vector<8x32xbf16> to vector<8x8xbf16>
    %310 = vector.extract_strided_slice %272 {offsets = [0, 16], sizes = [8, 8], strides = [1, 1]} : vector<8x32xbf16> to vector<8x8xbf16>
    %cst_93 = arith.constant dense<0.000000e+00> : vector<8x8xf32>
    %311 = tpu.matmul %309, %310, %cst_93 {dimension_numbers = #tpu.dot_dimension_numbers<[1], [1], [0], [0], [0, 0, 1, 0], [], []>} : vector<8x8xbf16>, vector<8x8xbf16>, vector<8x8xf32> -> vector<8x8xf32>
    %312 = arith.addf %311, %65 : vector<8x8xf32>
    %cst_94 = arith.constant dense<0xFF800000> : vector<8xf32>
    %313 = vector.multi_reduction <maximumf>, %312, %cst_94 [1] : vector<8x8xf32> to vector<8xf32>
    %314 = vector.shape_cast %313 : vector<8xf32> to vector<8x1xf32>
    %315 = vector.broadcast %314 : vector<8x1xf32> to vector<8x8xf32>
    %316 = arith.subf %312, %315 : vector<8x8xf32>
    %317 = math.exp %316 : vector<8x8xf32>
    %cst_95 = arith.constant dense<0.000000e+00> : vector<8xf32>
    %318 = vector.multi_reduction <add>, %317, %cst_95 [1] : vector<8x8xf32> to vector<8xf32>
    %319 = vector.shape_cast %318 : vector<8xf32> to vector<8x1xf32>
    %320 = tpu.reciprocal %319 {approx = true} : vector<8x1xf32> -> vector<8x1xf32>
    %321 = vector.broadcast %320 : vector<8x1xf32> to vector<8x8xf32>
    %322 = arith.mulf %317, %321 : vector<8x8xf32>
    %323 = arith.truncf %322 : vector<8x8xf32> to vector<8x8xbf16>
    %324 = vector.extract_strided_slice %274 {offsets = [0, 16], sizes = [8, 8], strides = [1, 1]} : vector<8x32xbf16> to vector<8x8xbf16>
    %cst_96 = arith.constant dense<0.000000e+00> : vector<8x8xf32>
    %325 = tpu.matmul %323, %324, %cst_96 {dimension_numbers = #tpu.dot_dimension_numbers<[1], [0], [0], [1], [0, 0, 1, 1], [], []>} : vector<8x8xbf16>, vector<8x8xbf16>, vector<8x8xf32> -> vector<8x8xf32>
    %326 = vector.extract_strided_slice %270 {offsets = [0, 24], sizes = [8, 8], strides = [1, 1]} : vector<8x32xbf16> to vector<8x8xbf16>
    %327 = vector.extract_strided_slice %272 {offsets = [0, 24], sizes = [8, 8], strides = [1, 1]} : vector<8x32xbf16> to vector<8x8xbf16>
    %cst_97 = arith.constant dense<0.000000e+00> : vector<8x8xf32>
    %328 = tpu.matmul %326, %327, %cst_97 {dimension_numbers = #tpu.dot_dimension_numbers<[1], [1], [0], [0], [0, 0, 1, 0], [], []>} : vector<8x8xbf16>, vector<8x8xbf16>, vector<8x8xf32> -> vector<8x8xf32>
    %329 = arith.addf %328, %65 : vector<8x8xf32>
    %cst_98 = arith.constant dense<0xFF800000> : vector<8xf32>
    %330 = vector.multi_reduction <maximumf>, %329, %cst_98 [1] : vector<8x8xf32> to vector<8xf32>
    %331 = vector.shape_cast %330 : vector<8xf32> to vector<8x1xf32>
    %332 = vector.broadcast %331 : vector<8x1xf32> to vector<8x8xf32>
    %333 = arith.subf %329, %332 : vector<8x8xf32>
    %334 = math.exp %333 : vector<8x8xf32>
    %cst_99 = arith.constant dense<0.000000e+00> : vector<8xf32>
    %335 = vector.multi_reduction <add>, %334, %cst_99 [1] : vector<8x8xf32> to vector<8xf32>
    %336 = vector.shape_cast %335 : vector<8xf32> to vector<8x1xf32>
    %337 = tpu.reciprocal %336 {approx = true} : vector<8x1xf32> -> vector<8x1xf32>
    %338 = vector.broadcast %337 : vector<8x1xf32> to vector<8x8xf32>
    %339 = arith.mulf %334, %338 : vector<8x8xf32>
    %340 = arith.truncf %339 : vector<8x8xf32> to vector<8x8xbf16>
    %341 = vector.extract_strided_slice %274 {offsets = [0, 24], sizes = [8, 8], strides = [1, 1]} : vector<8x32xbf16> to vector<8x8xbf16>
    %cst_100 = arith.constant dense<0.000000e+00> : vector<8x8xf32>
    %342 = tpu.matmul %340, %341, %cst_100 {dimension_numbers = #tpu.dot_dimension_numbers<[1], [0], [0], [1], [0, 0, 1, 1], [], []>} : vector<8x8xbf16>, vector<8x8xbf16>, vector<8x8xf32> -> vector<8x8xf32>
    %343 = tpu.concatenate %291, %308, %325, %342 in 1 : vector<8x8xf32>, vector<8x8xf32>, vector<8x8xf32>, vector<8x8xf32> -> vector<8x32xf32>
    %344 = arith.truncf %343 : vector<8x32xf32> to vector<8x32xbf16>
    %c1_101 = arith.constant 1 : index
    %c0_102 = arith.constant 0 : index
    %c0_103 = arith.constant 0 : index
    %345 = vector.load %arg5[%c1_101, %c0_102, %c0_103] : memref<2x32x32xbf16, #tpu.memory_space<vmem>>, vector<1x32x32xbf16>
    %346 = vector.shape_cast %345 : vector<1x32x32xbf16> to vector<32x32xbf16>
    %cst_104 = arith.constant dense<0.000000e+00> : vector<8x32xf32>
    %347 = tpu.matmul %344, %346, %cst_104 {dimension_numbers = #tpu.dot_dimension_numbers<[1], [0], [0], [1], [0, 0, 1, 1], [], []>} : vector<8x32xbf16>, vector<32x32xbf16>, vector<8x32xf32> -> vector<8x32xf32>
    %348 = arith.addf %229, %347 : vector<8x32xf32>
    %349 = vector.broadcast %235 : vector<1x32xf32> to vector<8x32xf32>
    %350 = arith.addf %348, %349 : vector<8x32xf32>
    %cst_105 = arith.constant dense<0.000000e+00> : vector<8xf32>
    %351 = vector.multi_reduction <add>, %350, %cst_105 [1] : vector<8x32xf32> to vector<8xf32>
    %352 = vector.shape_cast %351 : vector<8xf32> to vector<8x1xf32>
    %cst_106 = arith.constant 3.200000e+01 : f32
    %353 = vector.broadcast %cst_106 : f32 to vector<8x1xf32>
    %354 = arith.divf %352, %353 : vector<8x1xf32>
    %355 = vector.broadcast %354 : vector<8x1xf32> to vector<8x32xf32>
    %356 = arith.subf %350, %355 : vector<8x32xf32>
    %357 = arith.mulf %356, %356 : vector<8x32xf32>
    %cst_107 = arith.constant dense<0.000000e+00> : vector<8xf32>
    %358 = vector.multi_reduction <add>, %357, %cst_107 [1] : vector<8x32xf32> to vector<8xf32>
    %359 = vector.shape_cast %358 : vector<8xf32> to vector<8x1xf32>
    %cst_108 = arith.constant 3.200000e+01 : f32
    %360 = vector.broadcast %cst_108 : f32 to vector<8x1xf32>
    %361 = arith.divf %359, %360 : vector<8x1xf32>
    %362 = vector.broadcast %354 : vector<8x1xf32> to vector<8x32xf32>
    %363 = arith.subf %350, %362 : vector<8x32xf32>
    %cst_109 = arith.constant 9.99999974E-6 : f32
    %364 = vector.broadcast %cst_109 : f32 to vector<8x1xf32>
    %365 = arith.addf %361, %364 : vector<8x1xf32>
    %366 = math.rsqrt %365 : vector<8x1xf32>
    %367 = vector.broadcast %366 : vector<8x1xf32> to vector<8x32xf32>
    %368 = arith.mulf %363, %367 : vector<8x32xf32>
    %369 = vector.broadcast %236 : vector<1x32xf32> to vector<8x32xf32>
    %370 = arith.mulf %368, %369 : vector<8x32xf32>
    %371 = vector.broadcast %237 : vector<1x32xf32> to vector<8x32xf32>
    %372 = arith.addf %370, %371 : vector<8x32xf32>
    %373 = arith.truncf %372 : vector<8x32xf32> to vector<8x32xbf16>
    %c1_110 = arith.constant 1 : index
    %c0_111 = arith.constant 0 : index
    %c0_112 = arith.constant 0 : index
    %374 = vector.load %arg6[%c1_110, %c0_111, %c0_112] : memref<2x32x128xbf16, #tpu.memory_space<vmem>>, vector<1x32x128xbf16>
    %375 = vector.shape_cast %374 : vector<1x32x128xbf16> to vector<32x128xbf16>
    %cst_113 = arith.constant dense<0.000000e+00> : vector<8x128xf32>
    %376 = tpu.matmul %373, %375, %cst_113 {dimension_numbers = #tpu.dot_dimension_numbers<[1], [0], [0], [1], [0, 0, 1, 1], [], []>} : vector<8x32xbf16>, vector<32x128xbf16>, vector<8x128xf32> -> vector<8x128xf32>
    %377 = vector.broadcast %240 : vector<1x128xf32> to vector<8x128xf32>
    %378 = arith.addf %376, %377 : vector<8x128xf32>
    %cst_114 = arith.constant 1.702000e+00 : f32
    %379 = vector.broadcast %cst_114 : f32 to vector<8x128xf32>
    %380 = arith.mulf %379, %378 : vector<8x128xf32>
    %381 = arith.negf %380 : vector<8x128xf32>
    %382 = math.exp %381 : vector<8x128xf32>
    %cst_115 = arith.constant 1.000000e+00 : f32
    %383 = vector.broadcast %cst_115 : f32 to vector<8x128xf32>
    %384 = arith.addf %383, %382 : vector<8x128xf32>
    %385 = arith.divf %383, %384 : vector<8x128xf32>
    %386 = arith.mulf %378, %385 : vector<8x128xf32>
    %387 = arith.truncf %386 : vector<8x128xf32> to vector<8x128xbf16>
    %c1_116 = arith.constant 1 : index
    %c0_117 = arith.constant 0 : index
    %c0_118 = arith.constant 0 : index
    %388 = vector.load %arg7[%c1_116, %c0_117, %c0_118] : memref<2x128x32xbf16, #tpu.memory_space<vmem>>, vector<1x128x32xbf16>
    %389 = vector.shape_cast %388 : vector<1x128x32xbf16> to vector<128x32xbf16>
    %cst_119 = arith.constant dense<0.000000e+00> : vector<8x32xf32>
    %390 = tpu.matmul %387, %389, %cst_119 {dimension_numbers = #tpu.dot_dimension_numbers<[1], [0], [0], [1], [0, 0, 1, 1], [], []>} : vector<8x128xbf16>, vector<128x32xbf16>, vector<8x32xf32> -> vector<8x32xf32>
    %391 = arith.addf %350, %390 : vector<8x32xf32>
    %392 = vector.broadcast %238 : vector<1x32xf32> to vector<8x32xf32>
    %393 = arith.addf %391, %392 : vector<8x32xf32>
    %c0_120 = arith.constant 0 : index
    %c0_121 = arith.constant 0 : index
    %394 = vector.load %arg10[%c0_120, %c0_121] : memref<8x32xf32, #tpu.memory_space<vmem>>, vector<8x32xf32>
    tpu.vector_store %arg10[%c0_120, %c0_121], %393 {strides = array<i32>} : memref<8x32xf32, #tpu.memory_space<vmem>>, vector<8x32xf32>,
    return
  }
  func.func @transform_0(%arg0: i32) -> (i32, i32) {
    %c0_i32 = arith.constant 0 : i32
    %c0_i32_0 = arith.constant 0 : i32
    %c0_i32_1 = arith.constant 0 : i32
    return %c0_i32, %c0_i32_0 : i32, i32
  }
  func.func @transform_1(%arg0: i32) -> (i32, i32) {
    %c0_i32 = arith.constant 0 : i32
    %c0_i32_0 = arith.constant 0 : i32
    %c0_i32_1 = arith.constant 0 : i32
    return %c0_i32, %c0_i32_0 : i32, i32
  }
  func.func @transform_2(%arg0: i32) -> (i32, i32) {
    %c0_i32 = arith.constant 0 : i32
    %c0_i32_0 = arith.constant 0 : i32
    %c0_i32_1 = arith.constant 0 : i32
    return %c0_i32, %c0_i32_0 : i32, i32
  }
  func.func @transform_3(%arg0: i32) -> (i32, i32, i32) {
    %c0_i32 = arith.constant 0 : i32
    %c0_i32_0 = arith.constant 0 : i32
    %c0_i32_1 = arith.constant 0 : i32
    %c0_i32_2 = arith.constant 0 : i32
    return %c0_i32, %c0_i32_0, %c0_i32_1 : i32, i32, i32
  }
  func.func @transform_4(%arg0: i32) -> (i32, i32, i32) {
    %c0_i32 = arith.constant 0 : i32
    %c0_i32_0 = arith.constant 0 : i32
    %c0_i32_1 = arith.constant 0 : i32
    %c0_i32_2 = arith.constant 0 : i32
    return %c0_i32, %c0_i32_0, %c0_i32_1 : i32, i32, i32
  }
  func.func @transform_5(%arg0: i32) -> (i32, i32, i32) {
    %c0_i32 = arith.constant 0 : i32
    %c0_i32_0 = arith.constant 0 : i32
    %c0_i32_1 = arith.constant 0 : i32
    %c0_i32_2 = arith.constant 0 : i32
    return %c0_i32, %c0_i32_0, %c0_i32_1 : i32, i32, i32
  }
  func.func @transform_6(%arg0: i32) -> (i32, i32, i32) {
    %c0_i32 = arith.constant 0 : i32
    %c0_i32_0 = arith.constant 0 : i32
    %c0_i32_1 = arith.constant 0 : i32
    %c0_i32_2 = arith.constant 0 : i32
    return %c0_i32, %c0_i32_0, %c0_i32_1 : i32, i32, i32
  }
  func.func @transform_7(%arg0: i32) -> (i32, i32, i32) {
    %c0_i32 = arith.constant 0 : i32
    %c0_i32_0 = arith.constant 0 : i32
    %c0_i32_1 = arith.constant 0 : i32
    %c0_i32_2 = arith.constant 0 : i32
    return %c0_i32, %c0_i32_0, %c0_i32_1 : i32, i32, i32
  }
  func.func @transform_8(%arg0: i32) -> (i32, i32, i32) {
    %c0_i32 = arith.constant 0 : i32
    %c0_i32_0 = arith.constant 0 : i32
    %c0_i32_1 = arith.constant 0 : i32
    %c0_i32_2 = arith.constant 0 : i32
    return %c0_i32, %c0_i32_0, %c0_i32_1 : i32, i32, i32
  }
  func.func @transform_9(%arg0: i32) -> (i32, i32) {
    %c0_i32 = arith.constant 0 : i32
    %c0_i32_0 = arith.constant 0 : i32
    %c0_i32_1 = arith.constant 0 : i32
    return %c0_i32, %c0_i32_0 : i32, i32
  }
}

</mosaic_0001>

<llo_original>
// kernel: feature_extractor_forward.1
$region0: #{feature_extractor_forward.1}
  #allocation0 [shape = 'u32[]', space=smem, size = 0x4, offset = 0x4, fixed_abs, tag = 'smem constant byte address 0x4 - core index']
  #allocation1 [shape = 'u32[72,128]{1,0:T(1,128)}', space=vmem, size = 0x9000, scoped, tag = 'internal scratch']
  %s0 = inlined_call_operand.vmem [shape: bf16[8,192], index: 0, kind: input, shape index: {}]
  %s1 = inlined_call_operand.vmem [shape: bf16[192,32], index: 1, kind: input, shape index: {}]
  %s2 = inlined_call_operand.vmem [shape: f32[2,32], index: 2, kind: input, shape index: {}]
  %s3 = inlined_call_operand.vmem [shape: bf16[2,32,96], index: 3, kind: input, shape index: {}]
  %s4 = inlined_call_operand.vmem [shape: bf16[2,32,32], index: 4, kind: input, shape index: {}]
  %s5 = inlined_call_operand.vmem [shape: bf16[2,32,128], index: 5, kind: input, shape index: {}]
  %s6 = inlined_call_operand.vmem [shape: bf16[2,128,32], index: 6, kind: input, shape index: {}]
  %s7 = inlined_call_operand.vmem [shape: f32[2,7,32], index: 7, kind: input, shape index: {}]
  %s8 = inlined_call_operand.vmem [shape: f32[2,1,128], index: 8, kind: input, shape index: {}]
  %s9 = inlined_call_operand.vmem [shape: f32[8,32], index: 9, kind: output, shape index: {}]
  %s10 = sld [smem:[#allocation0]]
  $region46: #{feature_extractor_forward.1} parent=0
    _
  %s12 = ssub.s32 1, %s10
  %s13 = scalar_select 0, %s12, %s10
  // Predicated region
  $region2: #{feature_extractor_forward.1} parent=0 // pred_check
    _
  $region3: #{feature_extractor_forward.1} parent=0 // pred_check_branch
    %15 = sbr.rel (0) target = $region5
  $region4: #{feature_extractor_forward.1} parent=0 // pred_region
    _
  $region5: #{feature_extractor_forward.1} parent=0 // pred_fallthru
    _
  // Predicated region
  $region6: #{feature_extractor_forward.1} parent=0 // pred_check
    _
  $region7: #{feature_extractor_forward.1} parent=0 // pred_check_branch
    %17 = sbr.rel (0) target = $region9
  $region8: #{feature_extractor_forward.1} parent=0 // pred_region
    _
  $region9: #{feature_extractor_forward.1} parent=0 // pred_fallthru
    _
  // Predicated region
  $region10: #{feature_extractor_forward.1} parent=0 // pred_check
    _
  $region11: #{feature_extractor_forward.1} parent=0 // pred_check_branch
    %19 = sbr.rel (0) target = $region13
  $region12: #{feature_extractor_forward.1} parent=0 // pred_region
    _
  $region13: #{feature_extractor_forward.1} parent=0 // pred_fallthru
    _
  // Predicated region
  $region14: #{feature_extractor_forward.1} parent=0 // pred_check
    _
  $region15: #{feature_extractor_forward.1} parent=0 // pred_check_branch
    %21 = sbr.rel (0) target = $region17
  $region16: #{feature_extractor_forward.1} parent=0 // pred_region
    _
  $region17: #{feature_extractor_forward.1} parent=0 // pred_fallthru
    _
  // Predicated region
  $region18: #{feature_extractor_forward.1} parent=0 // pred_check
    _
  $region19: #{feature_extractor_forward.1} parent=0 // pred_check_branch
    %23 = sbr.rel (0) target = $region21
  $region20: #{feature_extractor_forward.1} parent=0 // pred_region
    _
  $region21: #{feature_extractor_forward.1} parent=0 // pred_fallthru
    _
  // Predicated region
  $region22: #{feature_extractor_forward.1} parent=0 // pred_check
    _
  $region23: #{feature_extractor_forward.1} parent=0 // pred_check_branch
    %25 = sbr.rel (0) target = $region25
  $region24: #{feature_extractor_forward.1} parent=0 // pred_region
    _
  $region25: #{feature_extractor_forward.1} parent=0 // pred_fallthru
    _
  // Predicated region
  $region26: #{feature_extractor_forward.1} parent=0 // pred_check
    _
  $region27: #{feature_extractor_forward.1} parent=0 // pred_check_branch
    %27 = sbr.rel (0) target = $region29
  $region28: #{feature_extractor_forward.1} parent=0 // pred_region
    _
  $region29: #{feature_extractor_forward.1} parent=0 // pred_fallthru
    _
  // Predicated region
  $region30: #{feature_extractor_forward.1} parent=0 // pred_check
    _
  $region31: #{feature_extractor_forward.1} parent=0 // pred_check_branch
    %29 = sbr.rel (0) target = $region33
  $region32: #{feature_extractor_forward.1} parent=0 // pred_region
    _
  $region33: #{feature_extractor_forward.1} parent=0 // pred_fallthru
    _
  // Predicated region
  $region34: #{feature_extractor_forward.1} parent=0 // pred_check
    _
  $region35: #{feature_extractor_forward.1} parent=0 // pred_check_branch
    %31 = sbr.rel (0) target = $region37
  $region36: #{feature_extractor_forward.1} parent=0 // pred_region
    _
  $region37: #{feature_extractor_forward.1} parent=0 // pred_fallthru
    _
  %v33 = vld [vmem:[%s0] sm:$0xff]
  %v34 = vld [vmem:[%s1] sm:$0xf]
  %v35 = vld [vmem:[%s1 + $0x4] sm:$0xf]
  %v36 = vld [vmem:[%s1 + $0x8] sm:$0xf]
  %v37 = vld [vmem:[%s1 + $0xc] sm:$0xf]
  %v38 = vld [vmem:[%s1 + $0x10] sm:$0xf]
  %v39 = vld [vmem:[%s1 + $0x14] sm:$0xf]
  %v40 = vld [vmem:[%s1 + $0x18] sm:$0xf]
  %v41 = vld [vmem:[%s1 + $0x1c] sm:$0xf]
  %v42 = vld [vmem:[%s1 + $0x20] sm:$0xf]
  %v43 = vld [vmem:[%s1 + $0x24] sm:$0xf]
  %v44 = vld [vmem:[%s1 + $0x28] sm:$0xf]
  %v45 = vld [vmem:[%s1 + $0x2c] sm:$0xf]
  %v46 = vld [vmem:[%s1 + $0x30] sm:$0xf]
  %v47 = vld [vmem:[%s1 + $0x34] sm:$0xf]
  %v48 = vld [vmem:[%s1 + $0x38] sm:$0xf]
  %v49 = vld [vmem:[%s1 + $0x3c] sm:$0xf]
  %v50 = vld [vmem:[%s1 + $0x40] sm:$0xf]
  %v51 = vld [vmem:[%s1 + $0x44] sm:$0xf]
  %v52 = vld [vmem:[%s1 + $0x48] sm:$0xf]
  %v53 = vld [vmem:[%s1 + $0x4c] sm:$0xf]
  %v54 = vld [vmem:[%s1 + $0x50] sm:$0xf]
  %v55 = vld [vmem:[%s1 + $0x54] sm:$0xf]
  %v56 = vld [vmem:[%s1 + $0x58] sm:$0xf]
  %v57 = vld [vmem:[%s1 + $0x5c] sm:$0xf]
  %v59 = vunpack.c.l.b16 %v33
  %v60 = vunpack.c.h.b16 %v33
  %v61 = vpack.c.b16 %v59, %v59
  %v62 = vpack.c.b16 %v60, %v60
  %v88 = vunpack.c.l.b16 %v34
  %v89 = vunpack.c.l.b16 %v35
  %v90 = vunpack.c.l.b16 %v36
  %v91 = vunpack.c.l.b16 %v37
  %v92 = vunpack.c.l.b16 %v38
  %v93 = vunpack.c.l.b16 %v39
  %v94 = vunpack.c.l.b16 %v40
  %v95 = vunpack.c.l.b16 %v41
  %v96 = vunpack.c.l.b16 %v42
  %v97 = vunpack.c.l.b16 %v43
  %v98 = vunpack.c.l.b16 %v44
  %v99 = vunpack.c.l.b16 %v45
  %v100 = vunpack.c.l.b16 %v46
  %v101 = vunpack.c.l.b16 %v47
  %v102 = vunpack.c.l.b16 %v48
  %v103 = vunpack.c.l.b16 %v49
  %v104 = vunpack.c.l.b16 %v50
  %v105 = vunpack.c.l.b16 %v51
  %v106 = vunpack.c.l.b16 %v52
  %v107 = vunpack.c.l.b16 %v53
  %v108 = vunpack.c.l.b16 %v54
  %v109 = vunpack.c.l.b16 %v55
  %v110 = vunpack.c.l.b16 %v56
  %v111 = vunpack.c.l.b16 %v57
  %v112 = vpack.c.b16 %v89, %v88
  %v113 = vpack.c.b16 %v91, %v90
  %v114 = vpack.c.b16 %v93, %v92
  %v115 = vpack.c.b16 %v95, %v94
  %v116 = vpack.c.b16 %v97, %v96
  %v117 = vpack.c.b16 %v99, %v98
  %v118 = vpack.c.b16 %v101, %v100
  %v119 = vpack.c.b16 %v103, %v102
  %v120 = vpack.c.b16 %v105, %v104
  %v121 = vpack.c.b16 %v107, %v106
  %v122 = vpack.c.b16 %v109, %v108
  %v123 = vpack.c.b16 %v111, %v110
  %vm136 = vcmask 523264
  %v138 = vsel %vm136, %v62, 0
  %140 = vmatpush.bf16.msra.mxu0 %v119
  %141 = vmatpush.bf16.msra.mxu0 %v118
  %142 = vmatpush.bf16.msra.mxu0 %v117
  %143 = vmatpush.bf16.msra.mxu0 %v116
  %144 = vmatpush.bf16.msra.mxu0 %v115
  %145 = vmatpush.bf16.msra.mxu0 %v114
  %146 = vmatpush.bf16.msra.mxu0 %v113
  %147 = vmatpush.bf16.msra.mxu0 %v112
  %148 = vmatmul.bf16.gmra.mxu0 %v61
  %v149 = vpop.f32.mrf.mxu0
  %v150 = vadd.f32 0.0, %v149
  %v151 = vpop.f32.mrf.mxu0
  %152 = vdwg.mxu0
  %153 = vmatpush.bf16.msra.mxu0 0
  %154 = vmatpush.bf16.msra.mxu0 0
  %155 = vmatpush.bf16.msra.mxu0 0
  %156 = vmatpush.bf16.msra.mxu0 0
  %157 = vmatpush.bf16.msra.mxu0 %v123
  %158 = vmatpush.bf16.msra.mxu0 %v122
  %159 = vmatpush.bf16.msra.mxu0 %v121
  %160 = vmatpush.bf16.msra.mxu0 %v120
  %161 = vmatmul.bf16.gmra.mxu0 %v138
  %v162 = vpop.f32.mrf.mxu0
  %v163 = vadd.f32 %v150, %v162
  %v164 = vpop.f32.mrf.mxu0
  %165 = vdwg.mxu0
  %v166 = vld [vmem:[%s2] sm:$0x3]
  %vm167 = vcmask 261120
  %v168 = vsel %vm167, %v163, 0.0
  %169 = vadd.xlane.f32.xlu0 %v168
  %v170 = vpop.xlane.xlu0 %169
  %v171 = vrcp.pop 32.0
  %v172 = vmul.f32 32.0, %v171
  %v173 = vsub.f32 1.0, %v172
  %v174 = vmul.f32 %v171, %v173
  %v175 = vadd.f32 %v171, %v174
  %vm176 = vweird.f32 %v171
  %v177 = vsel %vm176, %v171, %v175
  %v178 = vmul.f32 %v170, %v177
  %v179 = vsub.f32 %v163, %v178
  %v180 = vmul.f32 %v179, %v179
  %v181 = vsel %vm167, %v180, 0.0
  %182 = vadd.xlane.f32.xlu0 %v181
  %v183 = vpop.xlane.xlu0 %182
  %v184 = vmul.f32 %v183, %v177
  %v185 = vadd.f32 %v184, 1e-05
  %v186 = vrsqrt.pop %v185
  %v187 = vmul.f32 %v186, %v185
  %v188 = vmul.f32 %v187, %v186
  %v189 = vmul.f32 0.5, %v188
  %v190 = vsub.f32 1.5, %v189
  %v191 = vmul.f32 %v186, %v190
  %vm192 = vweird.f32 %v185
  %vm193 = vweird.f32 %v186
  %vm194 = vmor %vm192, %vm193
  %v195 = vsel %vm194, %v186, %v191
  %v196 = vmul.f32 %v179, %v195
  %v197 = vperm.slane %v166, 0
  %v198 = vmul.f32 %v196, %v197
  %v199 = vperm.slane %v166, 1
  %v200 = vadd.f32 %v198, %v199
  %v201 = vlaneseq
  %v202 = vshrl.u32 %v201, 7
  %v203 = vlaneseq
  %v204 = vand.u32 %v203, 127
  %vm205 = vcmp.lt.s32.totalorder %v202, 0
  %v206 = vsub.s32 0, %v202
  %v207 = vsel %vm205, %v206, %v202
  %v208 = vshrl.u32 %v207, 2
  %v209 = vand.u32 %v207, 3
  %v210 = vsub.s32 0, %v209
  %v211 = vsel %vm205, %v210, %v209
  %vm212 = vcmp.ne.s32.totalorder %v211, 0
  %vm213 = vcmp.lt.s32.totalorder %v211, 0
  %vm214 = vmand %vm213, %vm212
  %v215 = vadd.s32 %v211, 4
  %v216 = vsel %vm214, %v215, %v211
  %vm217 = vcmp.lt.s32.totalorder %v204, 0
  %v218 = vsub.s32 0, %v204
  %v219 = vsel %vm217, %v218, %v204
  %v220 = vshrl.u32 %v219, 2
  %v221 = vand.u32 %v219, 3
  %v222 = vsub.s32 0, %v221
  %v223 = vsel %vm217, %v222, %v221
  %vm224 = vcmp.ne.s32.totalorder %v223, 0
  %vm225 = vcmp.lt.s32.totalorder %v223, 0
  %vm226 = vmand %vm225, %vm224
  %v227 = vadd.s32 %v223, 4
  %v228 = vsel %vm226, %v227, %v223
  %vm229 = vcmp.eq.s32.totalorder %v216, %v228
  %v230 = vsel %vm229, 0.0, -1e+30
  %v231 = vld [vmem:[%s7] sm:$0x7f]
  %v232 = vld [vmem:[%s8] sm:$0x1]
  %v233 = vsel %vm167, %v200, 0.0
  %234 = vadd.xlane.f32.xlu0 %v233
  %v235 = vpop.xlane.xlu0 %234
  %v236 = vmul.f32 %v235, %v177
  %v237 = vsub.f32 %v200, %v236
  %v238 = vmul.f32 %v237, %v237
  %v239 = vsel %vm167, %v238, 0.0
  %240 = vadd.xlane.f32.xlu0 %v239
  %v241 = vpop.xlane.xlu0 %240
  %v242 = vmul.f32 %v241, %v177
  %v243 = vadd.f32 %v242, 1e-05
  %v244 = vrsqrt.pop %v243
  %v245 = vmul.f32 %v244, %v243
  %v246 = vmul.f32 %v245, %v244
  %v247 = vmul.f32 0.5, %v246
  %v248 = vsub.f32 1.5, %v247
  %v249 = vmul.f32 %v244, %v248
  %vm250 = vweird.f32 %v243
  %vm251 = vweird.f32 %v244
  %vm252 = vmor %vm250, %vm251
  %v253 = vsel %vm252, %v244, %v249
  %v254 = vmul.f32 %v237, %v253
  %v255 = vperm.slane %v231, 0
  %v256 = vmul.f32 %v254, %v255
  %v257 = vperm.slane %v231, 1
  %v258 = vadd.f32 %v256, %v257
  %v259 = vpack.c.bf16 %v258, %v258
  %v260 = vld [vmem:[%s3] sm:$0xf]
  %v261 = vld [vmem:[%s3 + $0x4] sm:$0xf]
  %v262 = vld [vmem:[%s3 + $0x8] sm:$0xf]
  %v263 = vld [vmem:[%s3 + $0xc] sm:$0xf]
  %v268 = vunpack.c.l.b16 %v260
  %v269 = vunpack.c.l.b16 %v261
  %v270 = vunpack.c.l.b16 %v262
  %v271 = vunpack.c.l.b16 %v263
  %v272 = vpack.c.b16 %v269, %v268
  %v273 = vpack.c.b16 %v271, %v270
  %v277 = vsel %vm167, %v259, 0
  %279 = vmatpush.bf16.msra.mxu0 0
  %280 = vmatpush.bf16.msra.mxu0 0
  %281 = vmatpush.bf16.msra.mxu0 0
  %282 = vmatpush.bf16.msra.mxu0 0
  %283 = vmatpush.bf16.msra.mxu0 0
  %284 = vmatpush.bf16.msra.mxu0 0
  %285 = vmatpush.bf16.msra.mxu0 %v273
  %286 = vmatpush.bf16.msra.mxu0 %v272
  %287 = vmatmul.bf16.gmra.mxu0 %v277
  %v288 = vpop.f32.mrf.mxu0
  %v289 = vadd.f32 0.0, %v288
  %v290 = vpop.f32.mrf.mxu0
  %291 = vdwg.mxu0
  %v292 = vperm.slane %v231, 2
  %v293 = vadd.f32 %v289, %v292
  %v294 = vpack.c.bf16 %v293, %v293
  %v295 = vpack.c.bf16 %v289, %v289
  %v297 = vunpack.c.l.b16 %v295
  %v298 = vpack.c.b16 %v297, %v297
  %299 = vrot.lane.b32.xlu0 %v298, 96
  %v300 = vpop.permute.xlu0 %299
  %vm301 = vcmask 64512
  %v303 = vsel %vm301, %v294, 0
  %v306 = vsel %vm301, %v300, 0
  %308 = vmatpush.bf16.xpose.msra.mxu0 0
  %309 = vmatpush.bf16.xpose.msra.mxu0 0
  %310 = vmatpush.bf16.xpose.msra.mxu0 0
  %311 = vmatpush.bf16.xpose.msra.mxu0 0
  %312 = vmatpush.bf16.xpose.msra.mxu0 0
  %313 = vmatpush.bf16.xpose.msra.mxu0 0
  %314 = vmatpush.bf16.xpose.msra.mxu0 0
  %315 = vmatpush.bf16.xpose.msra.mxu0 %v306
  %316 = vmatmul.bf16.gmra.mxu0 %v303
  %v317 = vpop.f32.mrf.mxu0
  %v318 = vadd.f32 %v230, %v317
  %v319 = vpop.f32.mrf.mxu0
  %320 = vdwg.mxu0
  %v321 = vsel %vm301, %v318, -inf
  %322 = vmax.xlane.f32.xlu0 %v321
  %v323 = vpop.xlane.xlu0 %322
  %v324 = vsub.f32 %v318, %v323
  %v325 = vmul.f32 %v324, 1.442695
  %v326 = vpow.pop %v325
  %v327 = vsel %vm301, %v326, 0.0
  %328 = vadd.xlane.f32.xlu0 %v327
  %v329 = vpop.xlane.xlu0 %328
  %v330 = vrcp.pop %v329
  %v331 = vmul.f32 %v326, %v330
  %v332 = vpack.c.bf16 %v331, %v331
  %333 = vrot.lane.b32.xlu0 %v298, 64
  %v334 = vpop.permute.xlu0 %333
  %v336 = vsel %vm301, %v332, 0
  %vm338 = vcmask 1043456
  %v340 = vsel %vm338, %v334, 0
  %342 = vmatpush.bf16.msra.mxu0 0
  %343 = vmatpush.bf16.msra.mxu0 0
  %344 = vmatpush.bf16.msra.mxu0 0
  %345 = vmatpush.bf16.msra.mxu0 0
  %346 = vmatpush.bf16.msra.mxu0 0
  %347 = vmatpush.bf16.msra.mxu0 0
  %348 = vmatpush.bf16.msra.mxu0 0
  %349 = vmatpush.bf16.msra.mxu0 %v340
  %350 = vmatmul.bf16.gmra.mxu0 %v336
  %v351 = vpop.f32.mrf.mxu0
  %v352 = vadd.f32 0.0, %v351
  %v353 = vpop.f32.mrf.mxu0
  %354 = vdwg.mxu0
  %v356 = vunpack.c.l.b16 %v294
  %v357 = vpack.c.b16 %v356, %v356
  %358 = vrot.lane.b32.xlu0 %v357, 120
  %v359 = vpop.permute.xlu0 %358
  %360 = vrot.lane.b32.xlu0 %v298, 88
  %v361 = vpop.permute.xlu0 %360
  %v363 = vsel %vm301, %v359, 0
  %v366 = vsel %vm301, %v361, 0
  %368 = vmatpush.bf16.xpose.msra.mxu0 0
  %369 = vmatpush.bf16.xpose.msra.mxu0 0
  %370 = vmatpush.bf16.xpose.msra.mxu0 0
  %371 = vmatpush.bf16.xpose.msra.mxu0 0
  %372 = vmatpush.bf16.xpose.msra.mxu0 0
  %373 = vmatpush.bf16.xpose.msra.mxu0 0
  %374 = vmatpush.bf16.xpose.msra.mxu0 0
  %375 = vmatpush.bf16.xpose.msra.mxu0 %v366
  %376 = vmatmul.bf16.gmra.mxu0 %v363
  %v377 = vpop.f32.mrf.mxu0
  %v378 = vadd.f32 %v230, %v377
  %v379 = vpop.f32.mrf.mxu0
  %380 = vdwg.mxu0
  %v381 = vsel %vm301, %v378, -inf
  %382 = vmax.xlane.f32.xlu0 %v381
  %v383 = vpop.xlane.xlu0 %382
  %v384 = vsub.f32 %v378, %v383
  %v385 = vmul.f32 %v384, 1.442695
  %v386 = vpow.pop %v385
  %v387 = vsel %vm301, %v386, 0.0
  %388 = vadd.xlane.f32.xlu0 %v387
  %v389 = vpop.xlane.xlu0 %388
  %v390 = vrcp.pop %v389
  %v391 = vmul.f32 %v386, %v390
  %v392 = vpack.c.bf16 %v391, %v391
  %393 = vrot.lane.b32.xlu0 %v298, 56
  %v394 = vpop.permute.xlu0 %393
  %v396 = vsel %vm301, %v392, 0
  %v399 = vsel %vm338, %v394, 0
  %401 = vmatpush.bf16.msra.mxu0 0
  %402 = vmatpush.bf16.msra.mxu0 0
  %403 = vmatpush.bf16.msra.mxu0 0
  %404 = vmatpush.bf16.msra.mxu0 0
  %405 = vmatpush.bf16.msra.mxu0 0
  %406 = vmatpush.bf16.msra.mxu0 0
  %407 = vmatpush.bf16.msra.mxu0 0
  %408 = vmatpush.bf16.msra.mxu0 %v399
  %409 = vmatmul.bf16.gmra.mxu0 %v396
  %v410 = vpop.f32.mrf.mxu0
  %v411 = vadd.f32 0.0, %v410
  %v412 = vpop.f32.mrf.mxu0
  %413 = vdwg.mxu0
  %414 = vrot.lane.b32.xlu0 %v357, 112
  %v415 = vpop.permute.xlu0 %414
  %416 = vrot.lane.b32.xlu0 %v298, 80
  %v417 = vpop.permute.xlu0 %416
  %v419 = vsel %vm301, %v415, 0
  %v422 = vsel %vm301, %v417, 0
  %424 = vmatpush.bf16.xpose.msra.mxu0 0
  %425 = vmatpush.bf16.xpose.msra.mxu0 0
  %426 = vmatpush.bf16.xpose.msra.mxu0 0
  %427 = vmatpush.bf16.xpose.msra.mxu0 0
  %428 = vmatpush.bf16.xpose.msra.mxu0 0
  %429 = vmatpush.bf16.xpose.msra.mxu0 0
  %430 = vmatpush.bf16.xpose.msra.mxu0 0
  %431 = vmatpush.bf16.xpose.msra.mxu0 %v422
  %432 = vmatmul.bf16.gmra.mxu0 %v419
  %v433 = vpop.f32.mrf.mxu0
  %v434 = vadd.f32 %v230, %v433
  %v435 = vpop.f32.mrf.mxu0
  %436 = vdwg.mxu0
  %v437 = vsel %vm301, %v434, -inf
  %438 = vmax.xlane.f32.xlu0 %v437
  %v439 = vpop.xlane.xlu0 %438
  %v440 = vsub.f32 %v434, %v439
  %v441 = vmul.f32 %v440, 1.442695
  %v442 = vpow.pop %v441
  %v443 = vsel %vm301, %v442, 0.0
  %444 = vadd.xlane.f32.xlu0 %v443
  %v445 = vpop.xlane.xlu0 %444
  %v446 = vrcp.pop %v445
  %v447 = vmul.f32 %v442, %v446
  %v448 = vpack.c.bf16 %v447, %v447
  %449 = vrot.lane.b32.xlu0 %v298, 48
  %v450 = vpop.permute.xlu0 %449
  %v452 = vsel %vm301, %v448, 0
  %v455 = vsel %vm338, %v450, 0
  %457 = vmatpush.bf16.msra.mxu0 0
  %458 = vmatpush.bf16.msra.mxu0 0
  %459 = vmatpush.bf16.msra.mxu0 0
  %460 = vmatpush.bf16.msra.mxu0 0
  %461 = vmatpush.bf16.msra.mxu0 0
  %462 = vmatpush.bf16.msra.mxu0 0
  %463 = vmatpush.bf16.msra.mxu0 0
  %464 = vmatpush.bf16.msra.mxu0 %v455
  %465 = vmatmul.bf16.gmra.mxu0 %v452
  %v466 = vpop.f32.mrf.mxu0
  %v467 = vadd.f32 0.0, %v466
  %v468 = vpop.f32.mrf.mxu0
  %469 = vdwg.mxu0
  %470 = vrot.lane.b32.xlu0 %v357, 104
  %v471 = vpop.permute.xlu0 %470
  %472 = vrot.lane.b32.xlu0 %v298, 72
  %v473 = vpop.permute.xlu0 %472
  %v475 = vsel %vm301, %v471, 0
  %v478 = vsel %vm301, %v473, 0
  %480 = vmatpush.bf16.xpose.msra.mxu0 0
  %481 = vmatpush.bf16.xpose.msra.mxu0 0
  %482 = vmatpush.bf16.xpose.msra.mxu0 0
  %483 = vmatpush.bf16.xpose.msra.mxu0 0
  %484 = vmatpush.bf16.xpose.msra.mxu0 0
  %485 = vmatpush.bf16.xpose.msra.mxu0 0
  %486 = vmatpush.bf16.xpose.msra.mxu0 0
  %487 = vmatpush.bf16.xpose.msra.mxu0 %v478
  %488 = vmatmul.bf16.gmra.mxu0 %v475
  %v489 = vpop.f32.mrf.mxu0
  %v490 = vadd.f32 %v230, %v489
  %v491 = vpop.f32.mrf.mxu0
  %492 = vdwg.mxu0
  %v493 = vsel %vm301, %v490, -inf
  %494 = vmax.xlane.f32.xlu0 %v493
  %v495 = vpop.xlane.xlu0 %494
  %v496 = vsub.f32 %v490, %v495
  %v497 = vmul.f32 %v496, 1.442695
  %v498 = vpow.pop %v497
  %v499 = vsel %vm301, %v498, 0.0
  %500 = vadd.xlane.f32.xlu0 %v499
  %v501 = vpop.xlane.xlu0 %500
  %v502 = vrcp.pop %v501
  %v503 = vmul.f32 %v498, %v502
  %v504 = vpack.c.bf16 %v503, %v503
  %505 = vrot.lane.b32.xlu0 %v298, 40
  %v506 = vpop.permute.xlu0 %505
  %v508 = vsel %vm301, %v504, 0
  %v511 = vsel %vm338, %v506, 0
  %513 = vmatpush.bf16.msra.mxu0 0
  %514 = vmatpush.bf16.msra.mxu0 0
  %515 = vmatpush.bf16.msra.mxu0 0
  %516 = vmatpush.bf16.msra.mxu0 0
  %517 = vmatpush.bf16.msra.mxu0 0
  %518 = vmatpush.bf16.msra.mxu0 0
  %519 = vmatpush.bf16.msra.mxu0 0
  %520 = vmatpush.bf16.msra.mxu0 %v511
  %521 = vmatmul.bf16.gmra.mxu0 %v508
  %v522 = vpop.f32.mrf.mxu0
  %v523 = vadd.f32 0.0, %v522
  %v524 = vpop.f32.mrf.mxu0
  %525 = vdwg.mxu0
  %527 = vrot.lane.b32.xlu0 %v411, 8
  %v528 = vpop.permute.xlu0 %527
  %531 = vrot.lane.b32.xlu0 %v467, 16
  %v532 = vpop.permute.xlu0 %531
  %535 = vrot.lane.b32.xlu0 %v523, 24
  %v536 = vpop.permute.xlu0 %535
  %v538 = vsel %vm301, %v352, %v528
  %vm539 = vcmask 130048
  %v540 = vsel %vm539, %v538, %v532
  %vm541 = vcmask 195584
  %v542 = vsel %vm541, %v540, %v536
  %v543 = vpack.c.bf16 %v542, %v542
  %v544 = vld [vmem:[%s4] sm:$0xf]
  %v545 = vld [vmem:[%s4 + $0x4] sm:$0xf]
  %v546 = vld [vmem:[%s4 + $0x8] sm:$0xf]
  %v547 = vld [vmem:[%s4 + $0xc] sm:$0xf]
  %v552 = vunpack.c.l.b16 %v544
  %v553 = vunpack.c.l.b16 %v545
  %v554 = vunpack.c.l.b16 %v546
  %v555 = vunpack.c.l.b16 %v547
  %v556 = vpack.c.b16 %v553, %v552
  %v557 = vpack.c.b16 %v555, %v554
  %v561 = vsel %vm167, %v543, 0
  %563 = vmatpush.bf16.msra.mxu0 0
  %564 = vmatpush.bf16.msra.mxu0 0
  %565 = vmatpush.bf16.msra.mxu0 0
  %566 = vmatpush.bf16.msra.mxu0 0
  %567 = vmatpush.bf16.msra.mxu0 0
  %568 = vmatpush.bf16.msra.mxu0 0
  %569 = vmatpush.bf16.msra.mxu0 %v557
  %570 = vmatpush.bf16.msra.mxu0 %v556
  %571 = vmatmul.bf16.gmra.mxu0 %v561
  %v572 = vpop.f32.mrf.mxu0
  %v573 = vadd.f32 0.0, %v572
  %v574 = vpop.f32.mrf.mxu0
  %575 = vdwg.mxu0
  %v576 = vadd.f32 %v200, %v573
  %v577 = vperm.slane %v231, 3
  %v578 = vadd.f32 %v576, %v577
  %v579 = vsel %vm167, %v578, 0.0
  %580 = vadd.xlane.f32.xlu0 %v579
  %v581 = vpop.xlane.xlu0 %580
  %v582 = vmul.f32 %v581, %v177
  %v583 = vsub.f32 %v578, %v582
  %v584 = vmul.f32 %v583, %v583
  %v585 = vsel %vm167, %v584, 0.0
  %586 = vadd.xlane.f32.xlu0 %v585
  %v587 = vpop.xlane.xlu0 %586
  %v588 = vmul.f32 %v587, %v177
  %v589 = vadd.f32 %v588, 1e-05
  %v590 = vrsqrt.pop %v589
  %v591 = vmul.f32 %v590, %v589
  %v592 = vmul.f32 %v591, %v590
  %v593 = vmul.f32 0.5, %v592
  %v594 = vsub.f32 1.5, %v593
  %v595 = vmul.f32 %v590, %v594
  %vm596 = vweird.f32 %v589
  %vm597 = vweird.f32 %v590
  %vm598 = vmor %vm596, %vm597
  %v599 = vsel %vm598, %v590, %v595
  %v600 = vmul.f32 %v583, %v599
  %v601 = vperm.slane %v231, 4
  %v602 = vmul.f32 %v600, %v601
  %v603 = vperm.slane %v231, 5
  %v604 = vadd.f32 %v602, %v603
  %v605 = vpack.c.bf16 %v604, %v604
  %v606 = vld [vmem:[%s5] sm:$0xf]
  %v607 = vld [vmem:[%s5 + $0x4] sm:$0xf]
  %v608 = vld [vmem:[%s5 + $0x8] sm:$0xf]
  %v609 = vld [vmem:[%s5 + $0xc] sm:$0xf]
  %v611 = vperm.slane %v232, 0
  %v617 = vunpack.c.l.b16 %v606
  %v618 = vunpack.c.l.b16 %v607
  %v619 = vunpack.c.l.b16 %v608
  %v620 = vunpack.c.l.b16 %v609
  %v621 = vpack.c.b16 %v618, %v617
  %v622 = vpack.c.b16 %v620, %v619
  %v626 = vsel %vm167, %v605, 0
  %628 = vmatpush.bf16.msra.mxu0 0
  %629 = vmatpush.bf16.msra.mxu0 0
  %630 = vmatpush.bf16.msra.mxu0 0
  %631 = vmatpush.bf16.msra.mxu0 0
  %632 = vmatpush.bf16.msra.mxu0 0
  %633 = vmatpush.bf16.msra.mxu0 0
  %634 = vmatpush.bf16.msra.mxu0 %v622
  %635 = vmatpush.bf16.msra.mxu0 %v621
  %636 = vmatmul.bf16.gmra.mxu0 %v626
  %v637 = vpop.f32.mrf.mxu0
  %v638 = vadd.f32 %v611, %v637
  %v639 = vpop.f32.mrf.mxu0
  %640 = vdwg.mxu0
  %v641 = vmul.f32 %v638, 1.702
  %v642 = vxor.u32 %v641, 2147483648
  %v643 = vmul.f32 %v642, 1.442695
  %v644 = vpow.pop %v643
  %v645 = vadd.f32 %v644, 1.0
  %v646 = vrcp.pop %v645
  %v647 = vmul.f32 %v645, %v646
  %v648 = vsub.f32 1.0, %v647
  %v649 = vmul.f32 %v646, %v648
  %v650 = vadd.f32 %v646, %v649
  %vm651 = vweird.f32 %v645
  %vm652 = vweird.f32 %v646
  %vm653 = vmor %vm651, %vm652
  %v654 = vsel %vm653, %v646, %v650
  %v655 = vand.u32 2147483647, %v645
  %vm656 = vcmp.eq.f32.partialorder %v655, 8.507059e+37
  %v657 = vand.u32 %v645, 2147483648
  %v658 = vor.u32 1.1754944e-38, %v657
  %v659 = vsel %vm656, %v658, %v654
  %v660 = vmul.f32 1.0, %v659
  %v661 = vmul.f32 %v638, %v660
  %v662 = vpack.c.bf16 %v661, %v661
  %v663 = vld [vmem:[%s6] sm:$0xf]
  %v664 = vld [vmem:[%s6 + $0x4] sm:$0xf]
  %v665 = vld [vmem:[%s6 + $0x8] sm:$0xf]
  %v666 = vld [vmem:[%s6 + $0xc] sm:$0xf]
  %v667 = vld [vmem:[%s6 + $0x10] sm:$0xf]
  %v668 = vld [vmem:[%s6 + $0x14] sm:$0xf]
  %v669 = vld [vmem:[%s6 + $0x18] sm:$0xf]
  %v670 = vld [vmem:[%s6 + $0x1c] sm:$0xf]
  %v671 = vld [vmem:[%s6 + $0x20] sm:$0xf]
  %v672 = vld [vmem:[%s6 + $0x24] sm:$0xf]
  %v673 = vld [vmem:[%s6 + $0x28] sm:$0xf]
  %v674 = vld [vmem:[%s6 + $0x2c] sm:$0xf]
  %v675 = vld [vmem:[%s6 + $0x30] sm:$0xf]
  %v676 = vld [vmem:[%s6 + $0x34] sm:$0xf]
  %v677 = vld [vmem:[%s6 + $0x38] sm:$0xf]
  %v678 = vld [vmem:[%s6 + $0x3c] sm:$0xf]
  %v695 = vunpack.c.l.b16 %v663
  %v696 = vunpack.c.l.b16 %v664
  %v697 = vunpack.c.l.b16 %v665
  %v698 = vunpack.c.l.b16 %v666
  %v699 = vunpack.c.l.b16 %v667
  %v700 = vunpack.c.l.b16 %v668
  %v701 = vunpack.c.l.b16 %v669
  %v702 = vunpack.c.l.b16 %v670
  %v703 = vunpack.c.l.b16 %v671
  %v704 = vunpack.c.l.b16 %v672
  %v705 = vunpack.c.l.b16 %v673
  %v706 = vunpack.c.l.b16 %v674
  %v707 = vunpack.c.l.b16 %v675
  %v708 = vunpack.c.l.b16 %v676
  %v709 = vunpack.c.l.b16 %v677
  %v710 = vunpack.c.l.b16 %v678
  %v711 = vpack.c.b16 %v696, %v695
  %v712 = vpack.c.b16 %v698, %v697
  %v713 = vpack.c.b16 %v700, %v699
  %v714 = vpack.c.b16 %v702, %v701
  %v715 = vpack.c.b16 %v704, %v703
  %v716 = vpack.c.b16 %v706, %v705
  %v717 = vpack.c.b16 %v708, %v707
  %v718 = vpack.c.b16 %v710, %v709
  %727 = vmatpush.bf16.msra.mxu0 %v718
  %728 = vmatpush.bf16.msra.mxu0 %v717
  %729 = vmatpush.bf16.msra.mxu0 %v716
  %730 = vmatpush.bf16.msra.mxu0 %v715
  %731 = vmatpush.bf16.msra.mxu0 %v714
  %732 = vmatpush.bf16.msra.mxu0 %v713
  %733 = vmatpush.bf16.msra.mxu0 %v712
  %734 = vmatpush.bf16.msra.mxu0 %v711
  %735 = vmatmul.bf16.gmra.mxu0 %v662
  %v736 = vpop.f32.mrf.mxu0
  %v737 = vadd.f32 0.0, %v736
  %v738 = vpop.f32.mrf.mxu0
  %739 = vdwg.mxu0
  %v740 = vadd.f32 %v578, %v737
  %v741 = vperm.slane %v231, 6
  %v742 = vadd.f32 %v740, %v741
  %s743 = scalar_lea.vmem %s7, 8
  %v744 = vld [vmem:[%s743] sm:$0x7f]
  %s745 = scalar_lea.vmem %s8, 1
  %v746 = vld [vmem:[%s745] sm:$0x1]
  %v747 = vsel %vm167, %v742, 0.0
  %748 = vadd.xlane.f32.xlu0 %v747
  %v749 = vpop.xlane.xlu0 %748
  %v750 = vmul.f32 %v749, %v177
  %v751 = vsub.f32 %v742, %v750
  %v752 = vmul.f32 %v751, %v751
  %v753 = vsel %vm167, %v752, 0.0
  %754 = vadd.xlane.f32.xlu0 %v753
  %v755 = vpop.xlane.xlu0 %754
  %v756 = vmul.f32 %v755, %v177
  %v757 = vadd.f32 %v756, 1e-05
  %v758 = vrsqrt.pop %v757
  %v759 = vmul.f32 %v758, %v757
  %v760 = vmul.f32 %v759, %v758
  %v761 = vmul.f32 0.5, %v760
  %v762 = vsub.f32 1.5, %v761
  %v763 = vmul.f32 %v758, %v762
  %vm764 = vweird.f32 %v757
  %vm765 = vweird.f32 %v758
  %vm766 = vmor %vm764, %vm765
  %v767 = vsel %vm766, %v758, %v763
  %v768 = vmul.f32 %v751, %v767
  %v769 = vperm.slane %v744, 0
  %v770 = vmul.f32 %v768, %v769
  %v771 = vperm.slane %v744, 1
  %v772 = vadd.f32 %v770, %v771
  %v773 = vpack.c.bf16 %v772, %v772
  %s774 = scalar_lea.vmem %s3, 16
  %v775 = vld [vmem:[%s774] sm:$0xf]
  %v776 = vld [vmem:[%s774 + $0x4] sm:$0xf]
  %v777 = vld [vmem:[%s774 + $0x8] sm:$0xf]
  %v778 = vld [vmem:[%s774 + $0xc] sm:$0xf]
  %v783 = vunpack.c.l.b16 %v775
  %v784 = vunpack.c.l.b16 %v776
  %v785 = vunpack.c.l.b16 %v777
  %v786 = vunpack.c.l.b16 %v778
  %v787 = vpack.c.b16 %v784, %v783
  %v788 = vpack.c.b16 %v786, %v785
  %v792 = vsel %vm167, %v773, 0
  %794 = vmatpush.bf16.msra.mxu0 0
  %795 = vmatpush.bf16.msra.mxu0 0
  %796 = vmatpush.bf16.msra.mxu0 0
  %797 = vmatpush.bf16.msra.mxu0 0
  %798 = vmatpush.bf16.msra.mxu0 0
  %799 = vmatpush.bf16.msra.mxu0 0
  %800 = vmatpush.bf16.msra.mxu0 %v788
  %801 = vmatpush.bf16.msra.mxu0 %v787
  %802 = vmatmul.bf16.gmra.mxu0 %v792
  %v803 = vpop.f32.mrf.mxu0
  %v804 = vadd.f32 0.0, %v803
  %v805 = vpop.f32.mrf.mxu0
  %806 = vdwg.mxu0
  %v807 = vperm.slane %v744, 2
  %v808 = vadd.f32 %v804, %v807
  %v809 = vpack.c.bf16 %v808, %v808
  %v810 = vpack.c.bf16 %v804, %v804
  %v812 = vunpack.c.l.b16 %v810
  %v813 = vpack.c.b16 %v812, %v812
  %814 = vrot.lane.b32.xlu0 %v813, 96
  %v815 = vpop.permute.xlu0 %814
  %v817 = vsel %vm301, %v809, 0
  %v820 = vsel %vm301, %v815, 0
  %822 = vmatpush.bf16.xpose.msra.mxu0 0
  %823 = vmatpush.bf16.xpose.msra.mxu0 0
  %824 = vmatpush.bf16.xpose.msra.mxu0 0
  %825 = vmatpush.bf16.xpose.msra.mxu0 0
  %826 = vmatpush.bf16.xpose.msra.mxu0 0
  %827 = vmatpush.bf16.xpose.msra.mxu0 0
  %828 = vmatpush.bf16.xpose.msra.mxu0 0
  %829 = vmatpush.bf16.xpose.msra.mxu0 %v820
  %830 = vmatmul.bf16.gmra.mxu0 %v817
  %v831 = vpop.f32.mrf.mxu0
  %v832 = vadd.f32 %v230, %v831
  %v833 = vpop.f32.mrf.mxu0
  %834 = vdwg.mxu0
  %v835 = vsel %vm301, %v832, -inf
  %836 = vmax.xlane.f32.xlu0 %v835
  %v837 = vpop.xlane.xlu0 %836
  %v838 = vsub.f32 %v832, %v837
  %v839 = vmul.f32 %v838, 1.442695
  %v840 = vpow.pop %v839
  %v841 = vsel %vm301, %v840, 0.0
  %842 = vadd.xlane.f32.xlu0 %v841
  %v843 = vpop.xlane.xlu0 %842
  %v844 = vrcp.pop %v843
  %v845 = vmul.f32 %v840, %v844
  %v846 = vpack.c.bf16 %v845, %v845
  %847 = vrot.lane.b32.xlu0 %v813, 64
  %v848 = vpop.permute.xlu0 %847
  %v850 = vsel %vm301, %v846, 0
  %v853 = vsel %vm338, %v848, 0
  %855 = vmatpush.bf16.msra.mxu0 0
  %856 = vmatpush.bf16.msra.mxu0 0
  %857 = vmatpush.bf16.msra.mxu0 0
  %858 = vmatpush.bf16.msra.mxu0 0
  %859 = vmatpush.bf16.msra.mxu0 0
  %860 = vmatpush.bf16.msra.mxu0 0
  %861 = vmatpush.bf16.msra.mxu0 0
  %862 = vmatpush.bf16.msra.mxu0 %v853
  %863 = vmatmul.bf16.gmra.mxu0 %v850
  %v864 = vpop.f32.mrf.mxu0
  %v865 = vadd.f32 0.0, %v864
  %v866 = vpop.f32.mrf.mxu0
  %867 = vdwg.mxu0
  %v869 = vunpack.c.l.b16 %v809
  %v870 = vpack.c.b16 %v869, %v869
  %871 = vrot.lane.b32.xlu0 %v870, 120
  %v872 = vpop.permute.xlu0 %871
  %873 = vrot.lane.b32.xlu0 %v813, 88
  %v874 = vpop.permute.xlu0 %873
  %v876 = vsel %vm301, %v872, 0
  %v879 = vsel %vm301, %v874, 0
  %881 = vmatpush.bf16.xpose.msra.mxu0 0
  %882 = vmatpush.bf16.xpose.msra.mxu0 0
  %883 = vmatpush.bf16.xpose.msra.mxu0 0
  %884 = vmatpush.bf16.xpose.msra.mxu0 0
  %885 = vmatpush.bf16.xpose.msra.mxu0 0
  %886 = vmatpush.bf16.xpose.msra.mxu0 0
  %887 = vmatpush.bf16.xpose.msra.mxu0 0
  %888 = vmatpush.bf16.xpose.msra.mxu0 %v879
  %889 = vmatmul.bf16.gmra.mxu0 %v876
  %v890 = vpop.f32.mrf.mxu0
  %v891 = vadd.f32 %v230, %v890
  %v892 = vpop.f32.mrf.mxu0
  %893 = vdwg.mxu0
  %v894 = vsel %vm301, %v891, -inf
  %895 = vmax.xlane.f32.xlu0 %v894
  %v896 = vpop.xlane.xlu0 %895
  %v897 = vsub.f32 %v891, %v896
  %v898 = vmul.f32 %v897, 1.442695
  %v899 = vpow.pop %v898
  %v900 = vsel %vm301, %v899, 0.0
  %901 = vadd.xlane.f32.xlu0 %v900
  %v902 = vpop.xlane.xlu0 %901
  %v903 = vrcp.pop %v902
  %v904 = vmul.f32 %v899, %v903
  %v905 = vpack.c.bf16 %v904, %v904
  %906 = vrot.lane.b32.xlu0 %v813, 56
  %v907 = vpop.permute.xlu0 %906
  %v909 = vsel %vm301, %v905, 0
  %v912 = vsel %vm338, %v907, 0
  %914 = vmatpush.bf16.msra.mxu0 0
  %915 = vmatpush.bf16.msra.mxu0 0
  %916 = vmatpush.bf16.msra.mxu0 0
  %917 = vmatpush.bf16.msra.mxu0 0
  %918 = vmatpush.bf16.msra.mxu0 0
  %919 = vmatpush.bf16.msra.mxu0 0
  %920 = vmatpush.bf16.msra.mxu0 0
  %921 = vmatpush.bf16.msra.mxu0 %v912
  %922 = vmatmul.bf16.gmra.mxu0 %v909
  %v923 = vpop.f32.mrf.mxu0
  %v924 = vadd.f32 0.0, %v923
  %v925 = vpop.f32.mrf.mxu0
  %926 = vdwg.mxu0
  %927 = vrot.lane.b32.xlu0 %v870, 112
  %v928 = vpop.permute.xlu0 %927
  %929 = vrot.lane.b32.xlu0 %v813, 80
  %v930 = vpop.permute.xlu0 %929
  %v932 = vsel %vm301, %v928, 0
  %v935 = vsel %vm301, %v930, 0
  %937 = vmatpush.bf16.xpose.msra.mxu0 0
  %938 = vmatpush.bf16.xpose.msra.mxu0 0
  %939 = vmatpush.bf16.xpose.msra.mxu0 0
  %940 = vmatpush.bf16.xpose.msra.mxu0 0
  %941 = vmatpush.bf16.xpose.msra.mxu0 0
  %942 = vmatpush.bf16.xpose.msra.mxu0 0
  %943 = vmatpush.bf16.xpose.msra.mxu0 0
  %944 = vmatpush.bf16.xpose.msra.mxu0 %v935
  %945 = vmatmul.bf16.gmra.mxu0 %v932
  %v946 = vpop.f32.mrf.mxu0
  %v947 = vadd.f32 %v230, %v946
  %v948 = vpop.f32.mrf.mxu0
  %949 = vdwg.mxu0
  %v950 = vsel %vm301, %v947, -inf
  %951 = vmax.xlane.f32.xlu0 %v950
  %v952 = vpop.xlane.xlu0 %951
  %v953 = vsub.f32 %v947, %v952
  %v954 = vmul.f32 %v953, 1.442695
  %v955 = vpow.pop %v954
  %v956 = vsel %vm301, %v955, 0.0
  %957 = vadd.xlane.f32.xlu0 %v956
  %v958 = vpop.xlane.xlu0 %957
  %v959 = vrcp.pop %v958
  %v960 = vmul.f32 %v955, %v959
  %v961 = vpack.c.bf16 %v960, %v960
  %962 = vrot.lane.b32.xlu0 %v813, 48
  %v963 = vpop.permute.xlu0 %962
  %v965 = vsel %vm301, %v961, 0
  %v968 = vsel %vm338, %v963, 0
  %970 = vmatpush.bf16.msra.mxu0 0
  %971 = vmatpush.bf16.msra.mxu0 0
  %972 = vmatpush.bf16.msra.mxu0 0
  %973 = vmatpush.bf16.msra.mxu0 0
  %974 = vmatpush.bf16.msra.mxu0 0
  %975 = vmatpush.bf16.msra.mxu0 0
  %976 = vmatpush.bf16.msra.mxu0 0
  %977 = vmatpush.bf16.msra.mxu0 %v968
  %978 = vmatmul.bf16.gmra.mxu0 %v965
  %v979 = vpop.f32.mrf.mxu0
  %v980 = vadd.f32 0.0, %v979
  %v981 = vpop.f32.mrf.mxu0
  %982 = vdwg.mxu0
  %983 = vrot.lane.b32.xlu0 %v870, 104
  %v984 = vpop.permute.xlu0 %983
  %985 = vrot.lane.b32.xlu0 %v813, 72
  %v986 = vpop.permute.xlu0 %985
  %v988 = vsel %vm301, %v984, 0
  %v991 = vsel %vm301, %v986, 0
  %993 = vmatpush.bf16.xpose.msra.mxu0 0
  %994 = vmatpush.bf16.xpose.msra.mxu0 0
  %995 = vmatpush.bf16.xpose.msra.mxu0 0
  %996 = vmatpush.bf16.xpose.msra.mxu0 0
  %997 = vmatpush.bf16.xpose.msra.mxu0 0
  %998 = vmatpush.bf16.xpose.msra.mxu0 0
  %999 = vmatpush.bf16.xpose.msra.mxu0 0
  %1000 = vmatpush.bf16.xpose.msra.mxu0 %v991
  %1001 = vmatmul.bf16.gmra.mxu0 %v988
  %v1002 = vpop.f32.mrf.mxu0
  %v1003 = vadd.f32 %v230, %v1002
  %v1004 = vpop.f32.mrf.mxu0
  %1005 = vdwg.mxu0
  %v1006 = vsel %vm301, %v1003, -inf
  %1007 = vmax.xlane.f32.xlu0 %v1006
  %v1008 = vpop.xlane.xlu0 %1007
  %v1009 = vsub.f32 %v1003, %v1008
  %v1010 = vmul.f32 %v1009, 1.442695
  %v1011 = vpow.pop %v1010
  %v1012 = vsel %vm301, %v1011, 0.0
  %1013 = vadd.xlane.f32.xlu0 %v1012
  %v1014 = vpop.xlane.xlu0 %1013
  %v1015 = vrcp.pop %v1014
  %v1016 = vmul.f32 %v1011, %v1015
  %v1017 = vpack.c.bf16 %v1016, %v1016
  %1018 = vrot.lane.b32.xlu0 %v813, 40
  %v1019 = vpop.permute.xlu0 %1018
  %v1021 = vsel %vm301, %v1017, 0
  %v1024 = vsel %vm338, %v1019, 0
  %1026 = vmatpush.bf16.msra.mxu0 0
  %1027 = vmatpush.bf16.msra.mxu0 0
  %1028 = vmatpush.bf16.msra.mxu0 0
  %1029 = vmatpush.bf16.msra.mxu0 0
  %1030 = vmatpush.bf16.msra.mxu0 0
  %1031 = vmatpush.bf16.msra.mxu0 0
  %1032 = vmatpush.bf16.msra.mxu0 0
  %1033 = vmatpush.bf16.msra.mxu0 %v1024
  %1034 = vmatmul.bf16.gmra.mxu0 %v1021
  %v1035 = vpop.f32.mrf.mxu0
  %v1036 = vadd.f32 0.0, %v1035
  %v1037 = vpop.f32.mrf.mxu0
  %1038 = vdwg.mxu0
  %1040 = vrot.lane.b32.xlu0 %v924, 8
  %v1041 = vpop.permute.xlu0 %1040
  %1044 = vrot.lane.b32.xlu0 %v980, 16
  %v1045 = vpop.permute.xlu0 %1044
  %1048 = vrot.lane.b32.xlu0 %v1036, 24
  %v1049 = vpop.permute.xlu0 %1048
  %v1051 = vsel %vm301, %v865, %v1041
  %v1052 = vsel %vm539, %v1051, %v1045
  %v1053 = vsel %vm541, %v1052, %v1049
  %v1054 = vpack.c.bf16 %v1053, %v1053
  %s1055 = scalar_lea.vmem %s4, 16
  %v1056 = vld [vmem:[%s1055] sm:$0xf]
  %v1057 = vld [vmem:[%s1055 + $0x4] sm:$0xf]
  %v1058 = vld [vmem:[%s1055 + $0x8] sm:$0xf]
  %v1059 = vld [vmem:[%s1055 + $0xc] sm:$0xf]
  %v1064 = vunpack.c.l.b16 %v1056
  %v1065 = vunpack.c.l.b16 %v1057
  %v1066 = vunpack.c.l.b16 %v1058
  %v1067 = vunpack.c.l.b16 %v1059
  %v1068 = vpack.c.b16 %v1065, %v1064
  %v1069 = vpack.c.b16 %v1067, %v1066
  %v1073 = vsel %vm167, %v1054, 0
  %1075 = vmatpush.bf16.msra.mxu0 0
  %1076 = vmatpush.bf16.msra.mxu0 0
  %1077 = vmatpush.bf16.msra.mxu0 0
  %1078 = vmatpush.bf16.msra.mxu0 0
  %1079 = vmatpush.bf16.msra.mxu0 0
  %1080 = vmatpush.bf16.msra.mxu0 0
  %1081 = vmatpush.bf16.msra.mxu0 %v1069
  %1082 = vmatpush.bf16.msra.mxu0 %v1068
  %1083 = vmatmul.bf16.gmra.mxu0 %v1073
  %v1084 = vpop.f32.mrf.mxu0
  %v1085 = vadd.f32 0.0, %v1084
  %v1086 = vpop.f32.mrf.mxu0
  %1087 = vdwg.mxu0
  %v1088 = vadd.f32 %v742, %v1085
  %v1089 = vperm.slane %v744, 3
  %v1090 = vadd.f32 %v1088, %v1089
  %v1091 = vsel %vm167, %v1090, 0.0
  %1092 = vadd.xlane.f32.xlu0 %v1091
  %v1093 = vpop.xlane.xlu0 %1092
  %v1094 = vmul.f32 %v1093, %v177
  %v1095 = vsub.f32 %v1090, %v1094
  %v1096 = vmul.f32 %v1095, %v1095
  %v1097 = vsel %vm167, %v1096, 0.0
  %1098 = vadd.xlane.f32.xlu0 %v1097
  %v1099 = vpop.xlane.xlu0 %1098
  %v1100 = vmul.f32 %v1099, %v177
  %v1101 = vadd.f32 %v1100, 1e-05
  %v1102 = vrsqrt.pop %v1101
  %v1103 = vmul.f32 %v1102, %v1101
  %v1104 = vmul.f32 %v1103, %v1102
  %v1105 = vmul.f32 0.5, %v1104
  %v1106 = vsub.f32 1.5, %v1105
  %v1107 = vmul.f32 %v1102, %v1106
  %vm1108 = vweird.f32 %v1101
  %vm1109 = vweird.f32 %v1102
  %vm1110 = vmor %vm1108, %vm1109
  %v1111 = vsel %vm1110, %v1102, %v1107
  %v1112 = vmul.f32 %v1095, %v1111
  %v1113 = vperm.slane %v744, 4
  %v1114 = vmul.f32 %v1112, %v1113
  %v1115 = vperm.slane %v744, 5
  %v1116 = vadd.f32 %v1114, %v1115
  %v1117 = vpack.c.bf16 %v1116, %v1116
  %s1118 = scalar_lea.vmem %s5, 16
  %v1119 = vld [vmem:[%s1118] sm:$0xf]
  %v1120 = vld [vmem:[%s1118 + $0x4] sm:$0xf]
  %v1121 = vld [vmem:[%s1118 + $0x8] sm:$0xf]
  %v1122 = vld [vmem:[%s1118 + $0xc] sm:$0xf]
  %v1124 = vperm.slane %v746, 0
  %v1130 = vunpack.c.l.b16 %v1119
  %v1131 = vunpack.c.l.b16 %v1120
  %v1132 = vunpack.c.l.b16 %v1121
  %v1133 = vunpack.c.l.b16 %v1122
  %v1134 = vpack.c.b16 %v1131, %v1130
  %v1135 = vpack.c.b16 %v1133, %v1132
  %v1139 = vsel %vm167, %v1117, 0
  %1141 = vmatpush.bf16.msra.mxu0 0
  %1142 = vmatpush.bf16.msra.mxu0 0
  %1143 = vmatpush.bf16.msra.mxu0 0
  %1144 = vmatpush.bf16.msra.mxu0 0
  %1145 = vmatpush.bf16.msra.mxu0 0
  %1146 = vmatpush.bf16.msra.mxu0 0
  %1147 = vmatpush.bf16.msra.mxu0 %v1135
  %1148 = vmatpush.bf16.msra.mxu0 %v1134
  %1149 = vmatmul.bf16.gmra.mxu0 %v1139
  %v1150 = vpop.f32.mrf.mxu0
  %v1151 = vadd.f32 %v1124, %v1150
  %v1152 = vpop.f32.mrf.mxu0
  %1153 = vdwg.mxu0
  %v1154 = vmul.f32 %v1151, 1.702
  %v1155 = vxor.u32 %v1154, 2147483648
  %v1156 = vmul.f32 %v1155, 1.442695
  %v1157 = vpow.pop %v1156
  %v1158 = vadd.f32 %v1157, 1.0
  %v1159 = vrcp.pop %v1158
  %v1160 = vmul.f32 %v1158, %v1159
  %v1161 = vsub.f32 1.0, %v1160
  %v1162 = vmul.f32 %v1159, %v1161
  %v1163 = vadd.f32 %v1159, %v1162
  %vm1164 = vweird.f32 %v1158
  %vm1165 = vweird.f32 %v1159
  %vm1166 = vmor %vm1164, %vm1165
  %v1167 = vsel %vm1166, %v1159, %v1163
  %v1168 = vand.u32 2147483647, %v1158
  %vm1169 = vcmp.eq.f32.partialorder %v1168, 8.507059e+37
  %v1170 = vand.u32 %v1158, 2147483648
  %v1171 = vor.u32 1.1754944e-38, %v1170
  %v1172 = vsel %vm1169, %v1171, %v1167
  %v1173 = vmul.f32 1.0, %v1172
  %v1174 = vmul.f32 %v1151, %v1173
  %v1175 = vpack.c.bf16 %v1174, %v1174
  %s1176 = scalar_lea.vmem %s6, 64
  %v1177 = vld [vmem:[%s1176] sm:$0xf]
  %v1178 = vld [vmem:[%s1176 + $0x4] sm:$0xf]
  %v1179 = vld [vmem:[%s1176 + $0x8] sm:$0xf]
  %v1180 = vld [vmem:[%s1176 + $0xc] sm:$0xf]
  %v1181 = vld [vmem:[%s1176 + $0x10] sm:$0xf]
  %v1182 = vld [vmem:[%s1176 + $0x14] sm:$0xf]
  %v1183 = vld [vmem:[%s1176 + $0x18] sm:$0xf]
  %v1184 = vld [vmem:[%s1176 + $0x1c] sm:$0xf]
  %v1185 = vld [vmem:[%s1176 + $0x20] sm:$0xf]
  %v1186 = vld [vmem:[%s1176 + $0x24] sm:$0xf]
  %v1187 = vld [vmem:[%s1176 + $0x28] sm:$0xf]
  %v1188 = vld [vmem:[%s1176 + $0x2c] sm:$0xf]
  %v1189 = vld [vmem:[%s1176 + $0x30] sm:$0xf]
  %v1190 = vld [vmem:[%s1176 + $0x34] sm:$0xf]
  %v1191 = vld [vmem:[%s1176 + $0x38] sm:$0xf]
  %v1192 = vld [vmem:[%s1176 + $0x3c] sm:$0xf]
  %v1209 = vunpack.c.l.b16 %v1177
  %v1210 = vunpack.c.l.b16 %v1178
  %v1211 = vunpack.c.l.b16 %v1179
  %v1212 = vunpack.c.l.b16 %v1180
  %v1213 = vunpack.c.l.b16 %v1181
  %v1214 = vunpack.c.l.b16 %v1182
  %v1215 = vunpack.c.l.b16 %v1183
  %v1216 = vunpack.c.l.b16 %v1184
  %v1217 = vunpack.c.l.b16 %v1185
  %v1218 = vunpack.c.l.b16 %v1186
  %v1219 = vunpack.c.l.b16 %v1187
  %v1220 = vunpack.c.l.b16 %v1188
  %v1221 = vunpack.c.l.b16 %v1189
  %v1222 = vunpack.c.l.b16 %v1190
  %v1223 = vunpack.c.l.b16 %v1191
  %v1224 = vunpack.c.l.b16 %v1192
  %v1225 = vpack.c.b16 %v1210, %v1209
  %v1226 = vpack.c.b16 %v1212, %v1211
  %v1227 = vpack.c.b16 %v1214, %v1213
  %v1228 = vpack.c.b16 %v1216, %v1215
  %v1229 = vpack.c.b16 %v1218, %v1217
  %v1230 = vpack.c.b16 %v1220, %v1219
  %v1231 = vpack.c.b16 %v1222, %v1221
  %v1232 = vpack.c.b16 %v1224, %v1223
  %1241 = vmatpush.bf16.msra.mxu0 %v1232
  %1242 = vmatpush.bf16.msra.mxu0 %v1231
  %1243 = vmatpush.bf16.msra.mxu0 %v1230
  %1244 = vmatpush.bf16.msra.mxu0 %v1229
  %1245 = vmatpush.bf16.msra.mxu0 %v1228
  %1246 = vmatpush.bf16.msra.mxu0 %v1227
  %1247 = vmatpush.bf16.msra.mxu0 %v1226
  %1248 = vmatpush.bf16.msra.mxu0 %v1225
  %1249 = vmatmul.bf16.gmra.mxu0 %v1175
  %v1250 = vpop.f32.mrf.mxu0
  %v1251 = vadd.f32 0.0, %v1250
  %v1252 = vpop.f32.mrf.mxu0
  %1253 = vdwg.mxu0
  %v1254 = vadd.f32 %v1090, %v1251
  %v1255 = vperm.slane %v744, 6
  %v1256 = vadd.f32 %v1254, %v1255
  %1257 = vst.msk [vmem:[%s9] sm:$0xff] %vm167, %v1256
  // Predicated region
  $region38: #{feature_extractor_forward.1} parent=0 // pred_check
    _
  $region39: #{feature_extractor_forward.1} parent=0 // pred_check_branch
    %1259 = sbr.rel (0) target = $region41
  $region40: #{feature_extractor_forward.1} parent=0 // pred_region
    _
  $region41: #{feature_extractor_forward.1} parent=0 // pred_fallthru
    _
  // Predicated region
  $region42: #{feature_extractor_forward.1} parent=0 // pred_check
    _
  $region43: #{feature_extractor_forward.1} parent=0 // pred_check_branch
    %1261 = sbr.rel (0) target = $region45
  $region44: #{feature_extractor_forward.1} parent=0 // pred_region
    _
  $region45: #{feature_extractor_forward.1} parent=0 // pred_fallthru
    _

</llo_original>
